<compile_context>
chip_gen: v6e
topology: v6e:2x2x1
jax: 0.10.0
libtpu: 0.0.40
codegen_flags: <defaults>
</compile_context>

<pallas_src>
import functools

import jax
import jax.numpy as jnp
from jax.experimental import pallas as pl
from jax.experimental.pallas import tpu as pltpu


# ----------------------------- static model dimensions -----------------------------
D_RNA, D_ADT = 32, 16                 # dims_h
D_X = D_RNA + D_ADT                   # 48 packed feature lanes [rna | adt]
DIM_Z, DIM_C, DIM_B, DIM_S = 16, 12, 4, 4
D_ENC = 32                            # dims_enc_x[0] == dims_enc_x[1]
D_SE = 16                             # dims_enc_s[0]
D_DEC = 32                            # dims_dec_x[*]
D_SD = 16                             # dims_dec_s[0]

# -------- packed weight-slab layout (single lane-dense f32 array -> 1 DMA) ----------
# Row offsets are 8-aligned so every carved sub-block starts on a sublane boundary.
R_ENC1 = 0     # (52, 80) block-diag: [h_rna|h_adt|s_pp] -> [h1_rna|h1_adt|hs]
R_S1 = 56      # (32, 32) shared x-encoder layer 1
R_E2 = 88      # (16, 32) s-encoder layer 2
R_S2 = 104     # (32, 32) shared x-encoder layer 2 (-> mu|logvar)
R_DEC1 = 136   # (20, 48) block-diag: [z|b] -> [d1|sd1]
R_DEC2 = 160   # (48, 36) block-diag: [d1|sd1] -> [d2|s_r]
R_DEC3 = 208   # (32, 48) x-decoder output layer
R_BIAS = 240   # 7 bias rows (one per fused layer)
W_ROWS, W_LANES = 248, 128

# ------------------ packed data-slab lane layout (single input DMA) -----------------
L_X = 0                      # [x_rna(32) | x_adt(16)]
L_E = D_X                    # [e_rna(32) | e_adt(16)]
L_S = 2 * D_X                # one_hot(s)  (4)
L_EPS = L_S + DIM_S          # [eps_rna(16) | eps_adt(16)]
D_DATA = L_EPS + 2 * DIM_Z   # 132


# ----------------------------- in-kernel math helpers -----------------------------

def _mish(y):
    # mish(x) = x * tanh(softplus(x)); numerically-stable softplus
    sp = jnp.maximum(y, 0.0) + jnp.log1p(jnp.exp(-jnp.abs(y)))
    return y * jnp.tanh(sp)


def _safe_exp(x, eps=1e-12):
    # replicates scmidas `exp`: (x<0)*exp(clamp(x,max=0)) + (x>=0)/(exp(-clamp(x,min=0))+eps)
    neg = jnp.exp(jnp.minimum(x, 0.0))
    pos = 1.0 / (jnp.exp(-jnp.maximum(x, 0.0)) + eps)
    return jnp.where(x < 0, neg, pos)


def _sum2d(v):
    # full reduction of a 2-D tile, kept as a (1, 1) value (2-D friendly)
    return jnp.sum(jnp.sum(v, axis=1, keepdims=True), axis=0, keepdims=True)


def _pois_nll_full(pred, t):
    # PoissonNLLLoss(log_input=True, full=True, reduction='none')
    loss = jnp.exp(pred) - t * pred
    t_safe = jnp.where(t > 1.0, t, 1.0)
    stirling = t_safe * jnp.log(t_safe) - t_safe + 0.5 * jnp.log(2.0 * jnp.pi * t_safe)
    return loss + jnp.where(t > 1.0, stirling, 0.0)


# ----------------------------- the fused forward kernel -----------------------------

def _fused_net_kernel(data_ref, w_ref, out_ref, *, n, loss_s_recon, loss_mod_alignment):
    f32 = jnp.float32

    def W(row, rows, cols):            # static ref slice -> only the needed VMEM load
        return w_ref[row:row + rows, 0:cols]

    def B(i, cols):                    # bias row (1, cols), broadcasts over batch
        return w_ref[R_BIAS + i:R_BIAS + i + 1, 0:cols]

    def dense(a, row, rows, cols, bias_i, mish):
        y = jnp.dot(a, W(row, rows, cols), preferred_element_type=f32) + B(bias_i, cols)
        return _mish(y) if mish else y

    data = data_ref[...]                                   # (n, 132), one load
    x = data[:, L_X:L_X + D_X]                             # [x_rna | x_adt]
    e = data[:, L_E:L_E + D_X]                             # [e_rna | e_adt]
    s_pp = data[:, L_S:L_S + DIM_S]                        # one_hot(s)
    eps_rna = data[:, L_EPS:L_EPS + DIM_Z]
    eps_adt = data[:, L_EPS + DIM_Z:L_EPS + 2 * DIM_Z]

    # ---- preprocessing + fused first-stage encoders (one block-diag matmul) ----
    h = jnp.log1p(x) * e                                   # log1p(x)*e, both modalities
    a1 = jnp.concatenate([h, s_pp], axis=1)                # (n, 52)
    enc1 = dense(a1, R_ENC1, D_X + DIM_S, 2 * D_ENC + D_SE, 0, mish=True)      # (n, 80)
    h1 = jnp.concatenate([enc1[:, 0:D_ENC], enc1[:, D_ENC:2 * D_ENC]], axis=0)  # (2n, 32)
    hs = enc1[:, 2 * D_ENC:2 * D_ENC + D_SE]               # (n, 16)

    # ---- shared x-encoder (both modalities stacked) + s-encoder tail ----
    h2 = dense(h1, R_S1, D_ENC, D_ENC, 1, mish=True)       # (2n, 32)
    zz = dense(h2, R_S2, D_ENC, 2 * DIM_Z, 3, mish=False)  # (2n, 32) = [mu | logvar]
    zs = dense(hs, R_E2, D_SE, 2 * DIM_Z, 2, mish=False)   # (n, 32)

    mu_rna, lv_rna = zz[:n, :DIM_Z], zz[:n, DIM_Z:]
    mu_adt, lv_adt = zz[n:, :DIM_Z], zz[n:, DIM_Z:]
    mu_s, lv_s = zs[:, :DIM_Z], zs[:, DIM_Z:]

    # ---- product of experts (std-normal prior folded in analytically) ----
    t_prior = 1.0 / (1.0 + 1e-12)                          # = safe_exp(-0)
    t_rna, t_adt, t_s = _safe_exp(-lv_rna), _safe_exp(-lv_adt), _safe_exp(-lv_s)

    var_j = pl.reciprocal(t_prior + t_rna + t_adt + t_s, approx=True)   # EUP slot
    z_mu = (mu_rna * t_rna + mu_adt * t_adt + mu_s * t_s) * var_j
    z_logvar = jnp.log(var_j + 1e-12)
    z = z_mu                                               # eval mode: z = z_mu

    # ---- per-modality unimodal posteriors + reparameterized samples ----
    var_r = pl.reciprocal(t_prior + t_rna + t_s, approx=True)
    z_u_rna = (mu_rna * t_rna + mu_s * t_s) * var_r + jnp.sqrt(var_r + 1e-12) * eps_rna
    var_a = pl.reciprocal(t_prior + t_adt + t_s, approx=True)
    z_u_adt = (mu_adt * t_adt + mu_s * t_s) * var_a + jnp.sqrt(var_a + 1e-12) * eps_adt

    # ---- decoders (x-dec and s-dec fused block-diagonally) ----
    b_lat = z[:, DIM_C:]
    a5 = jnp.concatenate([z, b_lat], axis=1)               # (n, 20)
    dec1 = dense(a5, R_DEC1, DIM_Z + DIM_B, D_DEC + D_SD, 4, mish=True)        # [d1|sd1]
    dec2 = dense(dec1, R_DEC2, D_DEC + D_SD, D_DEC + DIM_S, 5, mish=False)     # (n, 36)
    d2 = _mish(dec2[:, :D_DEC])
    s_r = dec2[:, D_DEC:D_DEC + DIM_S]                     # (n, 4) s reconstruction
    x_r = dense(d2, R_DEC3, D_DEC, D_X, 6, mish=False)     # (n, 48) [rna | adt] pre

    # ---- loss epilogue (single fused reduction) ----
    pois = _sum2d(_pois_nll_full(x_r, x) * e)              # both modalities at once

    mx = jnp.max(s_r, axis=1, keepdims=True)
    lse = mx + jnp.log(jnp.sum(jnp.exp(s_r - mx), axis=1, keepdims=True))
    picked = jnp.sum(s_r * s_pp, axis=1, keepdims=True)
    ce = _sum2d(lse - picked)
    loss_recon = (pois + loss_s_recon * ce) / n

    kld = -0.5 * (1.0 + z_logvar - z_mu * z_mu - jnp.exp(z_logvar))
    loss_kld_z = (_sum2d(kld[:, :DIM_C]) + 5.0 * _sum2d(kld[:, DIM_C:])) / n

    z_mean = 0.5 * (z_u_rna + z_u_adt)
    topo = _sum2d((z_u_rna - z_mean) ** 2 + (z_u_adt - z_mean) ** 2)
    loss_topo = (topo / n) * loss_mod_alignment

    loss = loss_recon + loss_kld_z + loss_topo             # (1, 1)

    # ---- single lane-dense (n, 128) store: [z | z_u_rna | z_u_adt | loss bcast] ----
    out = jnp.concatenate(
        [z, z_u_rna, z_u_adt, jnp.broadcast_to(loss, (n, 128 - 3 * DIM_Z))], axis=1)
    out_ref[...] = out


# ----------------------------- model glue (plain JAX) -----------------------------

class Config:
    pass


def make_config():
    o = Config()
    o.ref_mods = ["rna", "adt"]
    o.dims_x = {"rna": 32, "adt": 16}
    o.dims_h = {"rna": 32, "adt": 16}
    o.dims_enc_x = [32, 32]
    o.dims_dec_x = [32, 32]
    o.dims_enc_s = [16]
    o.dims_dec_s = [16]
    o.dim_z = 16
    o.dim_c = 12
    o.dim_b = 4
    o.dim_s = 4
    o.norm = False
    o.drop = False
    o.drop_s = 0
    o.s_drop_rate = 0.1
    o.loss_s_recon = 0.1
    o.loss_mod_alignment = 50.0
    return o


def init_mlp(key, features, scale=0.1):
    params = []
    for i in range(1, len(features)):
        key, k1, k2 = jax.random.split(key, 3)
        w = scale * jax.random.normal(k1, (features[i - 1], features[i]), jnp.float32)
        b = scale * jax.random.normal(k2, (1, features[i]), jnp.float32)
        params.append((w, b))
    return key, params


def init_net_params(key, o):
    params = {}
    key, params["x_shared_enc"] = init_mlp(key, o.dims_enc_x + [o.dim_z * 2])
    indiv = {}
    for m in o.ref_mods:
        key, indiv[m] = init_mlp(key, [o.dims_h[m], o.dims_enc_x[0]])
    params["x_indiv_enc"] = indiv
    key, params["x_dec"] = init_mlp(key, [o.dim_z] + o.dims_dec_x + [sum(o.dims_h.values())])
    key, params["s_enc"] = init_mlp(key, [o.dim_s] + o.dims_enc_s + [o.dim_z * 2])
    key, params["s_dec"] = init_mlp(key, [o.dim_b] + o.dims_dec_s + [o.dim_s])
    return params


def pack_weights(params):
    """Pack all 26 weight/bias tensors into one lane-dense (248, 128) f32 slab."""
    w_ir, b_ir = params["x_indiv_enc"]["rna"][0]
    w_ia, b_ia = params["x_indiv_enc"]["adt"][0]
    (w_s1, b_s1), (w_s2, b_s2) = params["x_shared_enc"]
    (w_e1, b_e1), (w_e2, b_e2) = params["s_enc"]
    (w_d1, b_d1), (w_d2, b_d2), (w_d3, b_d3) = params["x_dec"]
    (w_t1, b_t1), (w_t2, b_t2) = params["s_dec"]

    w = jnp.zeros((W_ROWS, W_LANES), jnp.float32)
    # ENC1 block-diag (52, 80): [h_rna | h_adt | s_pp] -> [h1_rna | h1_adt | hs]
    w = w.at[R_ENC1 + 0:R_ENC1 + 32, 0:32].set(w_ir)
    w = w.at[R_ENC1 + 32:R_ENC1 + 48, 32:64].set(w_ia)
    w = w.at[R_ENC1 + 48:R_ENC1 + 52, 64:80].set(w_e1)
    w = w.at[R_BIAS + 0, 0:32].set(b_ir[0])
    w = w.at[R_BIAS + 0, 32:64].set(b_ia[0])
    w = w.at[R_BIAS + 0, 64:80].set(b_e1[0])
    # shared x-encoder layers + s-encoder layer 2
    w = w.at[R_S1:R_S1 + 32, 0:32].set(w_s1)
    w = w.at[R_BIAS + 1, 0:32].set(b_s1[0])
    w = w.at[R_E2:R_E2 + 16, 0:32].set(w_e2)
    w = w.at[R_BIAS + 2, 0:32].set(b_e2[0])
    w = w.at[R_S2:R_S2 + 32, 0:32].set(w_s2)
    w = w.at[R_BIAS + 3, 0:32].set(b_s2[0])
    # DEC1 block-diag (20, 48): [z | b] -> [d1 | sd1]
    w = w.at[R_DEC1 + 0:R_DEC1 + 16, 0:32].set(w_d1)
    w = w.at[R_DEC1 + 16:R_DEC1 + 20, 32:48].set(w_t1)
    w = w.at[R_BIAS + 4, 0:32].set(b_d1[0])
    w = w.at[R_BIAS + 4, 32:48].set(b_t1[0])
    # DEC2 block-diag (48, 36): [d1 | sd1] -> [d2 | s_r]
    w = w.at[R_DEC2 + 0:R_DEC2 + 32, 0:32].set(w_d2)
    w = w.at[R_DEC2 + 32:R_DEC2 + 48, 32:36].set(w_t2)
    w = w.at[R_BIAS + 5, 0:32].set(b_d2[0])
    w = w.at[R_BIAS + 5, 32:36].set(b_t2[0])
    # DEC3
    w = w.at[R_DEC3:R_DEC3 + 32, 0:48].set(w_d3)
    w = w.at[R_BIAS + 6, 0:48].set(b_d3[0])
    return w


def net_forward(w_slab, inputs, o, noise_key):
    """Mirrors Net.forward (eval mode: no BN/Dropout, z = z_mu, s always used)."""
    x_rna = inputs["x"]["rna"].astype(jnp.float32)
    x_adt = inputs["x"]["adt"].astype(jnp.float32)
    e_rna = inputs["e"]["rna"].astype(jnp.float32)
    e_adt = inputs["e"]["adt"].astype(jnp.float32)
    s_idx = inputs["s"]["joint"].astype(jnp.int32)            # (N, 1)
    n = x_rna.shape[0]

    # preprocessing that is cheaper host/XLA-side: one_hot(s) + reparam noise
    s_pp = jax.nn.one_hot(s_idx[:, 0], o.dim_s, dtype=jnp.float32)
    eps = jax.random.normal(noise_key, (n, 2 * o.dim_z), jnp.float32)
    # single lane-dense data slab: [x_rna|x_adt | e_rna|e_adt | one_hot(s) | eps]
    data = jnp.concatenate([x_rna, x_adt, e_rna, e_adt, s_pp, eps], axis=1)  # (n, 132)

    kernel = functools.partial(
        _fused_net_kernel, n=n,
        loss_s_recon=o.loss_s_recon, loss_mod_alignment=o.loss_mod_alignment)

    out = pl.pallas_call(
        kernel,
        out_shape=jax.ShapeDtypeStruct((n, 128), jnp.float32),
        in_specs=[pl.BlockSpec(memory_space=pltpu.MemorySpace.VMEM),
                  pl.BlockSpec(memory_space=pltpu.MemorySpace.VMEM)],
        out_specs=pl.BlockSpec(memory_space=pltpu.MemorySpace.VMEM),
        # Hook for later tuning (dimension_semantics / vmem_limit once a batch grid is
        # added for non-toy batch sizes).
        compiler_params=pltpu.CompilerParams(),
    )(data, w_slab)

    loss = out[0, 3 * o.dim_z]
    c_all = {
        "joint": out[:, 0:o.dim_c],
        "rna": out[:, o.dim_z:o.dim_z + o.dim_c],
        "adt": out[:, 2 * o.dim_z:2 * o.dim_z + o.dim_c],
    }
    return loss, c_all


# ----------------------------- driver -----------------------------

if __name__ == "__main__":
    o = make_config()
    N = 8

    params = init_net_params(jax.random.PRNGKey(0), o)
    w_slab = pack_weights(params)                      # one-time host-side packing

    key = jax.random.PRNGKey(0)
    kx1, kx2, ke1, ke2, ks, kn = jax.random.split(key, 6)
    x_rna = jax.random.poisson(kx1, 3.0, (N, o.dims_x["rna"])).astype(jnp.float32)
    x_adt = jax.random.poisson(kx2, 5.0, (N, o.dims_x["adt"])).astype(jnp.float32)
    e_rna = (jax.random.uniform(ke1, (N, o.dims_x["rna"])) > 0.1).astype(jnp.float32)
    e_adt = (jax.random.uniform(ke2, (N, o.dims_x["adt"])) > 0.1).astype(jnp.float32)
    s_joint = jax.random.randint(ks, (N, 1), 0, o.dim_s, jnp.int32)

    inputs = {
        "x": {"rna": x_rna, "adt": x_adt},
        "e": {"rna": e_rna, "adt": e_adt},
        "s": {"joint": s_joint},
    }

    fwd = jax.jit(functools.partial(net_forward, o=o))
    loss, c_all = fwd(w_slab, inputs, noise_key=kn)
    loss = jax.block_until_ready(loss)
    c_all = jax.block_until_ready(c_all)

    assert jnp.isfinite(loss), "loss is not finite"
    assert c_all["joint"].shape == (N, o.dim_c)
    assert c_all["rna"].shape == (N, o.dim_c)
    assert c_all["adt"].shape == (N, o.dim_c)
    print("KERNEL_OK")
</pallas_src>

<mosaic_0001>
module attributes {stable_mosaic.version = 11 : i64} {
  func.func @_fused_net_kernel(%arg0: memref<8x132xf32, #tpu.memory_space<vmem>>, %arg1: memref<248x128xf32, #tpu.memory_space<vmem>>, %arg2: memref<8x128xf32, #tpu.memory_space<vmem>>) attributes {dimension_semantics = [], scalar_prefetch = 0 : i64, scratch_operands = 0 : i64, tpu.core_type = #tpu.core_type<tc>} {
    %c0 = arith.constant 0 : index
    %c0_0 = arith.constant 0 : index
    %0 = vector.load %arg0[%c0, %c0_0] : memref<8x132xf32, #tpu.memory_space<vmem>>, vector<8x132xf32>
    %1 = vector.extract_strided_slice %0 {offsets = [0, 0], sizes = [8, 48], strides = [1, 1]} : vector<8x132xf32> to vector<8x48xf32>
    %2 = vector.extract_strided_slice %0 {offsets = [0, 48], sizes = [8, 48], strides = [1, 1]} : vector<8x132xf32> to vector<8x48xf32>
    %3 = vector.extract_strided_slice %0 {offsets = [0, 96], sizes = [8, 4], strides = [1, 1]} : vector<8x132xf32> to vector<8x4xf32>
    %4 = vector.extract_strided_slice %0 {offsets = [0, 100], sizes = [8, 16], strides = [1, 1]} : vector<8x132xf32> to vector<8x16xf32>
    %5 = vector.extract_strided_slice %0 {offsets = [0, 116], sizes = [8, 16], strides = [1, 1]} : vector<8x132xf32> to vector<8x16xf32>
    %6 = math.log1p %1 : vector<8x48xf32>
    %7 = arith.mulf %6, %2 : vector<8x48xf32>
    %8 = tpu.concatenate %7, %3 in 1 : vector<8x48xf32>, vector<8x4xf32> -> vector<8x52xf32>
    %c0_1 = arith.constant 0 : index
    %c0_2 = arith.constant 0 : index
    %9 = vector.load %arg1[%c0_1, %c0_2] : memref<248x128xf32, #tpu.memory_space<vmem>>, vector<52x80xf32>
    %cst = arith.constant dense<0.000000e+00> : vector<8x80xf32>
    %10 = tpu.matmul %8, %9, %cst {dimension_numbers = #tpu.dot_dimension_numbers<[1], [0], [0], [1], [0, 0, 1, 1], [], []>} : vector<8x52xf32>, vector<52x80xf32>, vector<8x80xf32> -> vector<8x80xf32>
    %c240 = arith.constant 240 : index
    %c0_3 = arith.constant 0 : index
    %11 = vector.load %arg1[%c240, %c0_3] : memref<248x128xf32, #tpu.memory_space<vmem>>, vector<1x80xf32>
    %12 = vector.broadcast %11 : vector<1x80xf32> to vector<8x80xf32>
    %13 = arith.addf %10, %12 : vector<8x80xf32>
    %cst_4 = arith.constant 0.000000e+00 : f32
    %14 = vector.broadcast %cst_4 : f32 to vector<8x80xf32>
    %15 = arith.maximumf %13, %14 : vector<8x80xf32>
    %16 = math.absf %13 : vector<8x80xf32>
    %cst_5 = arith.constant 0.000000e+00 : f32
    %17 = vector.broadcast %cst_5 : f32 to vector<8x80xf32>
    %18 = arith.subf %17, %16 : vector<8x80xf32>
    %19 = math.exp %18 : vector<8x80xf32>
    %20 = math.log1p %19 : vector<8x80xf32>
    %21 = arith.addf %15, %20 : vector<8x80xf32>
    %22 = math.tanh %21 : vector<8x80xf32>
    %23 = arith.mulf %13, %22 : vector<8x80xf32>
    %24 = vector.extract_strided_slice %23 {offsets = [0, 0], sizes = [8, 32], strides = [1, 1]} : vector<8x80xf32> to vector<8x32xf32>
    %25 = vector.extract_strided_slice %23 {offsets = [0, 32], sizes = [8, 32], strides = [1, 1]} : vector<8x80xf32> to vector<8x32xf32>
    %26 = tpu.concatenate %24, %25 in 0 : vector<8x32xf32>, vector<8x32xf32> -> vector<16x32xf32>
    %27 = vector.extract_strided_slice %23 {offsets = [0, 64], sizes = [8, 16], strides = [1, 1]} : vector<8x80xf32> to vector<8x16xf32>
    %c56 = arith.constant 56 : index
    %c0_6 = arith.constant 0 : index
    %28 = vector.load %arg1[%c56, %c0_6] : memref<248x128xf32, #tpu.memory_space<vmem>>, vector<32x32xf32>
    %cst_7 = arith.constant dense<0.000000e+00> : vector<16x32xf32>
    %29 = tpu.matmul %26, %28, %cst_7 {dimension_numbers = #tpu.dot_dimension_numbers<[1], [0], [0], [1], [0, 0, 1, 1], [], []>} : vector<16x32xf32>, vector<32x32xf32>, vector<16x32xf32> -> vector<16x32xf32>
    %c241 = arith.constant 241 : index
    %c0_8 = arith.constant 0 : index
    %30 = vector.load %arg1[%c241, %c0_8] : memref<248x128xf32, #tpu.memory_space<vmem>>, vector<1x32xf32>
    %31 = vector.broadcast %30 : vector<1x32xf32> to vector<16x32xf32>
    %32 = arith.addf %29, %31 : vector<16x32xf32>
    %cst_9 = arith.constant 0.000000e+00 : f32
    %33 = vector.broadcast %cst_9 : f32 to vector<16x32xf32>
    %34 = arith.maximumf %32, %33 : vector<16x32xf32>
    %35 = math.absf %32 : vector<16x32xf32>
    %cst_10 = arith.constant 0.000000e+00 : f32
    %36 = vector.broadcast %cst_10 : f32 to vector<16x32xf32>
    %37 = arith.subf %36, %35 : vector<16x32xf32>
    %38 = math.exp %37 : vector<16x32xf32>
    %39 = math.log1p %38 : vector<16x32xf32>
    %40 = arith.addf %34, %39 : vector<16x32xf32>
    %41 = math.tanh %40 : vector<16x32xf32>
    %42 = arith.mulf %32, %41 : vector<16x32xf32>
    %c104 = arith.constant 104 : index
    %c0_11 = arith.constant 0 : index
    %43 = vector.load %arg1[%c104, %c0_11] : memref<248x128xf32, #tpu.memory_space<vmem>>, vector<32x32xf32>
    %cst_12 = arith.constant dense<0.000000e+00> : vector<16x32xf32>
    %44 = tpu.matmul %42, %43, %cst_12 {dimension_numbers = #tpu.dot_dimension_numbers<[1], [0], [0], [1], [0, 0, 1, 1], [], []>} : vector<16x32xf32>, vector<32x32xf32>, vector<16x32xf32> -> vector<16x32xf32>
    %c243 = arith.constant 243 : index
    %c0_13 = arith.constant 0 : index
    %45 = vector.load %arg1[%c243, %c0_13] : memref<248x128xf32, #tpu.memory_space<vmem>>, vector<1x32xf32>
    %46 = vector.broadcast %45 : vector<1x32xf32> to vector<16x32xf32>
    %47 = arith.addf %44, %46 : vector<16x32xf32>
    %c88 = arith.constant 88 : index
    %c0_14 = arith.constant 0 : index
    %48 = vector.load %arg1[%c88, %c0_14] : memref<248x128xf32, #tpu.memory_space<vmem>>, vector<16x32xf32>
    %cst_15 = arith.constant dense<0.000000e+00> : vector<8x32xf32>
    %49 = tpu.matmul %27, %48, %cst_15 {dimension_numbers = #tpu.dot_dimension_numbers<[1], [0], [0], [1], [0, 0, 1, 1], [], []>} : vector<8x16xf32>, vector<16x32xf32>, vector<8x32xf32> -> vector<8x32xf32>
    %c242 = arith.constant 242 : index
    %c0_16 = arith.constant 0 : index
    %50 = vector.load %arg1[%c242, %c0_16] : memref<248x128xf32, #tpu.memory_space<vmem>>, vector<1x32xf32>
    %51 = vector.broadcast %50 : vector<1x32xf32> to vector<8x32xf32>
    %52 = arith.addf %49, %51 : vector<8x32xf32>
    %53 = vector.extract_strided_slice %47 {offsets = [0, 0], sizes = [8, 16], strides = [1, 1]} : vector<16x32xf32> to vector<8x16xf32>
    %54 = vector.extract_strided_slice %47 {offsets = [0, 16], sizes = [8, 16], strides = [1, 1]} : vector<16x32xf32> to vector<8x16xf32>
    %55 = vector.extract_strided_slice %47 {offsets = [8, 0], sizes = [8, 16], strides = [1, 1]} : vector<16x32xf32> to vector<8x16xf32>
    %56 = vector.extract_strided_slice %47 {offsets = [8, 16], sizes = [8, 16], strides = [1, 1]} : vector<16x32xf32> to vector<8x16xf32>
    %57 = vector.extract_strided_slice %52 {offsets = [0, 0], sizes = [8, 16], strides = [1, 1]} : vector<8x32xf32> to vector<8x16xf32>
    %58 = vector.extract_strided_slice %52 {offsets = [0, 16], sizes = [8, 16], strides = [1, 1]} : vector<8x32xf32> to vector<8x16xf32>
    %cst_17 = arith.constant 0.000000e+00 : f32
    %59 = vector.broadcast %cst_17 : f32 to vector<8x16xf32>
    %60 = arith.subf %59, %54 : vector<8x16xf32>
    %cst_18 = arith.constant 0.000000e+00 : f32
    %61 = vector.broadcast %cst_18 : f32 to vector<8x16xf32>
    %62 = arith.minimumf %60, %61 : vector<8x16xf32>
    %63 = math.exp %62 : vector<8x16xf32>
    %cst_19 = arith.constant 0.000000e+00 : f32
    %64 = vector.broadcast %cst_19 : f32 to vector<8x16xf32>
    %65 = arith.maximumf %60, %64 : vector<8x16xf32>
    %cst_20 = arith.constant 0.000000e+00 : f32
    %66 = vector.broadcast %cst_20 : f32 to vector<8x16xf32>
    %67 = arith.subf %66, %65 : vector<8x16xf32>
    %68 = math.exp %67 : vector<8x16xf32>
    %cst_21 = arith.constant 9.99999996E-13 : f32
    %69 = vector.broadcast %cst_21 : f32 to vector<8x16xf32>
    %70 = arith.addf %68, %69 : vector<8x16xf32>
    %cst_22 = arith.constant 1.000000e+00 : f32
    %71 = vector.broadcast %cst_22 : f32 to vector<8x16xf32>
    %72 = arith.divf %71, %70 : vector<8x16xf32>
    %cst_23 = arith.constant 0.000000e+00 : f32
    %73 = vector.broadcast %cst_23 : f32 to vector<8x16xf32>
    %74 = arith.cmpf olt, %60, %73 : vector<8x16xf32>
    %75 = arith.select %74, %63, %72 : vector<8x16xi1>, vector<8x16xf32>
    %cst_24 = arith.constant 0.000000e+00 : f32
    %76 = vector.broadcast %cst_24 : f32 to vector<8x16xf32>
    %77 = arith.subf %76, %56 : vector<8x16xf32>
    %cst_25 = arith.constant 0.000000e+00 : f32
    %78 = vector.broadcast %cst_25 : f32 to vector<8x16xf32>
    %79 = arith.minimumf %77, %78 : vector<8x16xf32>
    %80 = math.exp %79 : vector<8x16xf32>
    %cst_26 = arith.constant 0.000000e+00 : f32
    %81 = vector.broadcast %cst_26 : f32 to vector<8x16xf32>
    %82 = arith.maximumf %77, %81 : vector<8x16xf32>
    %cst_27 = arith.constant 0.000000e+00 : f32
    %83 = vector.broadcast %cst_27 : f32 to vector<8x16xf32>
    %84 = arith.subf %83, %82 : vector<8x16xf32>
    %85 = math.exp %84 : vector<8x16xf32>
    %cst_28 = arith.constant 9.99999996E-13 : f32
    %86 = vector.broadcast %cst_28 : f32 to vector<8x16xf32>
    %87 = arith.addf %85, %86 : vector<8x16xf32>
    %cst_29 = arith.constant 1.000000e+00 : f32
    %88 = vector.broadcast %cst_29 : f32 to vector<8x16xf32>
    %89 = arith.divf %88, %87 : vector<8x16xf32>
    %cst_30 = arith.constant 0.000000e+00 : f32
    %90 = vector.broadcast %cst_30 : f32 to vector<8x16xf32>
    %91 = arith.cmpf olt, %77, %90 : vector<8x16xf32>
    %92 = arith.select %91, %80, %89 : vector<8x16xi1>, vector<8x16xf32>
    %cst_31 = arith.constant 0.000000e+00 : f32
    %93 = vector.broadcast %cst_31 : f32 to vector<8x16xf32>
    %94 = arith.subf %93, %58 : vector<8x16xf32>
    %cst_32 = arith.constant 0.000000e+00 : f32
    %95 = vector.broadcast %cst_32 : f32 to vector<8x16xf32>
    %96 = arith.minimumf %94, %95 : vector<8x16xf32>
    %97 = math.exp %96 : vector<8x16xf32>
    %cst_33 = arith.constant 0.000000e+00 : f32
    %98 = vector.broadcast %cst_33 : f32 to vector<8x16xf32>
    %99 = arith.maximumf %94, %98 : vector<8x16xf32>
    %cst_34 = arith.constant 0.000000e+00 : f32
    %100 = vector.broadcast %cst_34 : f32 to vector<8x16xf32>
    %101 = arith.subf %100, %99 : vector<8x16xf32>
    %102 = math.exp %101 : vector<8x16xf32>
    %cst_35 = arith.constant 9.99999996E-13 : f32
    %103 = vector.broadcast %cst_35 : f32 to vector<8x16xf32>
    %104 = arith.addf %102, %103 : vector<8x16xf32>
    %cst_36 = arith.constant 1.000000e+00 : f32
    %105 = vector.broadcast %cst_36 : f32 to vector<8x16xf32>
    %106 = arith.divf %105, %104 : vector<8x16xf32>
    %cst_37 = arith.constant 0.000000e+00 : f32
    %107 = vector.broadcast %cst_37 : f32 to vector<8x16xf32>
    %108 = arith.cmpf olt, %94, %107 : vector<8x16xf32>
    %109 = arith.select %108, %97, %106 : vector<8x16xi1>, vector<8x16xf32>
    %cst_38 = arith.constant 1.000000e+00 : f32
    %110 = vector.broadcast %cst_38 : f32 to vector<8x16xf32>
    %111 = arith.addf %110, %75 : vector<8x16xf32>
    %112 = arith.addf %111, %92 : vector<8x16xf32>
    %113 = arith.addf %112, %109 : vector<8x16xf32>
    %114 = tpu.reciprocal %113 {approx = true} : vector<8x16xf32> -> vector<8x16xf32>
    %115 = arith.mulf %53, %75 : vector<8x16xf32>
    %116 = arith.mulf %55, %92 : vector<8x16xf32>
    %117 = arith.addf %115, %116 : vector<8x16xf32>
    %118 = arith.mulf %57, %109 : vector<8x16xf32>
    %119 = arith.addf %117, %118 : vector<8x16xf32>
    %120 = arith.mulf %119, %114 : vector<8x16xf32>
    %cst_39 = arith.constant 9.99999996E-13 : f32
    %121 = vector.broadcast %cst_39 : f32 to vector<8x16xf32>
    %122 = arith.addf %114, %121 : vector<8x16xf32>
    %123 = math.log %122 : vector<8x16xf32>
    %cst_40 = arith.constant 1.000000e+00 : f32
    %124 = vector.broadcast %cst_40 : f32 to vector<8x16xf32>
    %125 = arith.addf %124, %75 : vector<8x16xf32>
    %126 = arith.addf %125, %109 : vector<8x16xf32>
    %127 = tpu.reciprocal %126 {approx = true} : vector<8x16xf32> -> vector<8x16xf32>
    %128 = arith.mulf %53, %75 : vector<8x16xf32>
    %129 = arith.mulf %57, %109 : vector<8x16xf32>
    %130 = arith.addf %128, %129 : vector<8x16xf32>
    %131 = arith.mulf %130, %127 : vector<8x16xf32>
    %cst_41 = arith.constant 9.99999996E-13 : f32
    %132 = vector.broadcast %cst_41 : f32 to vector<8x16xf32>
    %133 = arith.addf %127, %132 : vector<8x16xf32>
    %134 = math.sqrt %133 : vector<8x16xf32>
    %135 = arith.mulf %134, %4 : vector<8x16xf32>
    %136 = arith.addf %131, %135 : vector<8x16xf32>
    %cst_42 = arith.constant 1.000000e+00 : f32
    %137 = vector.broadcast %cst_42 : f32 to vector<8x16xf32>
    %138 = arith.addf %137, %92 : vector<8x16xf32>
    %139 = arith.addf %138, %109 : vector<8x16xf32>
    %140 = tpu.reciprocal %139 {approx = true} : vector<8x16xf32> -> vector<8x16xf32>
    %141 = arith.mulf %55, %92 : vector<8x16xf32>
    %142 = arith.mulf %57, %109 : vector<8x16xf32>
    %143 = arith.addf %141, %142 : vector<8x16xf32>
    %144 = arith.mulf %143, %140 : vector<8x16xf32>
    %cst_43 = arith.constant 9.99999996E-13 : f32
    %145 = vector.broadcast %cst_43 : f32 to vector<8x16xf32>
    %146 = arith.addf %140, %145 : vector<8x16xf32>
    %147 = math.sqrt %146 : vector<8x16xf32>
    %148 = arith.mulf %147, %5 : vector<8x16xf32>
    %149 = arith.addf %144, %148 : vector<8x16xf32>
    %150 = vector.extract_strided_slice %120 {offsets = [0, 12], sizes = [8, 4], strides = [1, 1]} : vector<8x16xf32> to vector<8x4xf32>
    %151 = tpu.concatenate %120, %150 in 1 : vector<8x16xf32>, vector<8x4xf32> -> vector<8x20xf32>
    %c136 = arith.constant 136 : index
    %c0_44 = arith.constant 0 : index
    %152 = vector.load %arg1[%c136, %c0_44] : memref<248x128xf32, #tpu.memory_space<vmem>>, vector<20x48xf32>
    %cst_45 = arith.constant dense<0.000000e+00> : vector<8x48xf32>
    %153 = tpu.matmul %151, %152, %cst_45 {dimension_numbers = #tpu.dot_dimension_numbers<[1], [0], [0], [1], [0, 0, 1, 1], [], []>} : vector<8x20xf32>, vector<20x48xf32>, vector<8x48xf32> -> vector<8x48xf32>
    %c244 = arith.constant 244 : index
    %c0_46 = arith.constant 0 : index
    %154 = vector.load %arg1[%c244, %c0_46] : memref<248x128xf32, #tpu.memory_space<vmem>>, vector<1x48xf32>
    %155 = vector.broadcast %154 : vector<1x48xf32> to vector<8x48xf32>
    %156 = arith.addf %153, %155 : vector<8x48xf32>
    %cst_47 = arith.constant 0.000000e+00 : f32
    %157 = vector.broadcast %cst_47 : f32 to vector<8x48xf32>
    %158 = arith.maximumf %156, %157 : vector<8x48xf32>
    %159 = math.absf %156 : vector<8x48xf32>
    %cst_48 = arith.constant 0.000000e+00 : f32
    %160 = vector.broadcast %cst_48 : f32 to vector<8x48xf32>
    %161 = arith.subf %160, %159 : vector<8x48xf32>
    %162 = math.exp %161 : vector<8x48xf32>
    %163 = math.log1p %162 : vector<8x48xf32>
    %164 = arith.addf %158, %163 : vector<8x48xf32>
    %165 = math.tanh %164 : vector<8x48xf32>
    %166 = arith.mulf %156, %165 : vector<8x48xf32>
    %c160 = arith.constant 160 : index
    %c0_49 = arith.constant 0 : index
    %167 = vector.load %arg1[%c160, %c0_49] : memref<248x128xf32, #tpu.memory_space<vmem>>, vector<48x36xf32>
    %cst_50 = arith.constant dense<0.000000e+00> : vector<8x36xf32>
    %168 = tpu.matmul %166, %167, %cst_50 {dimension_numbers = #tpu.dot_dimension_numbers<[1], [0], [0], [1], [0, 0, 1, 1], [], []>} : vector<8x48xf32>, vector<48x36xf32>, vector<8x36xf32> -> vector<8x36xf32>
    %c245 = arith.constant 245 : index
    %c0_51 = arith.constant 0 : index
    %169 = vector.load %arg1[%c245, %c0_51] : memref<248x128xf32, #tpu.memory_space<vmem>>, vector<1x36xf32>
    %170 = vector.broadcast %169 : vector<1x36xf32> to vector<8x36xf32>
    %171 = arith.addf %168, %170 : vector<8x36xf32>
    %172 = vector.extract_strided_slice %171 {offsets = [0, 0], sizes = [8, 32], strides = [1, 1]} : vector<8x36xf32> to vector<8x32xf32>
    %cst_52 = arith.constant 0.000000e+00 : f32
    %173 = vector.broadcast %cst_52 : f32 to vector<8x32xf32>
    %174 = arith.maximumf %172, %173 : vector<8x32xf32>
    %175 = math.absf %172 : vector<8x32xf32>
    %cst_53 = arith.constant 0.000000e+00 : f32
    %176 = vector.broadcast %cst_53 : f32 to vector<8x32xf32>
    %177 = arith.subf %176, %175 : vector<8x32xf32>
    %178 = math.exp %177 : vector<8x32xf32>
    %179 = math.log1p %178 : vector<8x32xf32>
    %180 = arith.addf %174, %179 : vector<8x32xf32>
    %181 = math.tanh %180 : vector<8x32xf32>
    %182 = arith.mulf %172, %181 : vector<8x32xf32>
    %183 = vector.extract_strided_slice %171 {offsets = [0, 32], sizes = [8, 4], strides = [1, 1]} : vector<8x36xf32> to vector<8x4xf32>
    %c208 = arith.constant 208 : index
    %c0_54 = arith.constant 0 : index
    %184 = vector.load %arg1[%c208, %c0_54] : memref<248x128xf32, #tpu.memory_space<vmem>>, vector<32x48xf32>
    %cst_55 = arith.constant dense<0.000000e+00> : vector<8x48xf32>
    %185 = tpu.matmul %182, %184, %cst_55 {dimension_numbers = #tpu.dot_dimension_numbers<[1], [0], [0], [1], [0, 0, 1, 1], [], []>} : vector<8x32xf32>, vector<32x48xf32>, vector<8x48xf32> -> vector<8x48xf32>
    %c246 = arith.constant 246 : index
    %c0_56 = arith.constant 0 : index
    %186 = vector.load %arg1[%c246, %c0_56] : memref<248x128xf32, #tpu.memory_space<vmem>>, vector<1x48xf32>
    %187 = vector.broadcast %186 : vector<1x48xf32> to vector<8x48xf32>
    %188 = arith.addf %185, %187 : vector<8x48xf32>
    %189 = math.exp %188 : vector<8x48xf32>
    %190 = arith.mulf %1, %188 : vector<8x48xf32>
    %191 = arith.subf %189, %190 : vector<8x48xf32>
    %cst_57 = arith.constant 1.000000e+00 : f32
    %192 = vector.broadcast %cst_57 : f32 to vector<8x48xf32>
    %193 = arith.cmpf ogt, %1, %192 : vector<8x48xf32>
    %cst_58 = arith.constant 1.000000e+00 : f32
    %194 = vector.broadcast %cst_58 : f32 to vector<8x48xf32>
    %195 = arith.select %193, %1, %194 : vector<8x48xi1>, vector<8x48xf32>
    %196 = math.log %195 : vector<8x48xf32>
    %197 = arith.mulf %195, %196 : vector<8x48xf32>
    %198 = arith.subf %197, %195 : vector<8x48xf32>
    %cst_59 = arith.constant 6.28318548 : f32
    %199 = vector.broadcast %cst_59 : f32 to vector<8x48xf32>
    %200 = arith.mulf %199, %195 : vector<8x48xf32>
    %201 = math.log %200 : vector<8x48xf32>
    %cst_60 = arith.constant 5.000000e-01 : f32
    %202 = vector.broadcast %cst_60 : f32 to vector<8x48xf32>
    %203 = arith.mulf %202, %201 : vector<8x48xf32>
    %204 = arith.addf %198, %203 : vector<8x48xf32>
    %cst_61 = arith.constant 1.000000e+00 : f32
    %205 = vector.broadcast %cst_61 : f32 to vector<8x48xf32>
    %206 = arith.cmpf ogt, %1, %205 : vector<8x48xf32>
    %cst_62 = arith.constant 0.000000e+00 : f32
    %207 = vector.broadcast %cst_62 : f32 to vector<8x48xf32>
    %208 = arith.select %206, %204, %207 : vector<8x48xi1>, vector<8x48xf32>
    %209 = arith.addf %191, %208 : vector<8x48xf32>
    %210 = arith.mulf %209, %2 : vector<8x48xf32>
    %cst_63 = arith.constant dense<0.000000e+00> : vector<8xf32>
    %211 = vector.multi_reduction <add>, %210, %cst_63 [1] : vector<8x48xf32> to vector<8xf32>
    %212 = vector.shape_cast %211 : vector<8xf32> to vector<8x1xf32>
    %cst_64 = arith.constant dense<0.000000e+00> : vector<1xf32>
    %213 = vector.multi_reduction <add>, %212, %cst_64 [0] : vector<8x1xf32> to vector<1xf32>
    %214 = vector.shape_cast %213 : vector<1xf32> to vector<1x1xf32>
    %cst_65 = arith.constant dense<0xFF800000> : vector<8xf32>
    %215 = vector.multi_reduction <maximumf>, %183, %cst_65 [1] : vector<8x4xf32> to vector<8xf32>
    %216 = vector.shape_cast %215 : vector<8xf32> to vector<8x1xf32>
    %217 = vector.broadcast %216 : vector<8x1xf32> to vector<8x4xf32>
    %218 = arith.subf %183, %217 : vector<8x4xf32>
    %219 = math.exp %218 : vector<8x4xf32>
    %cst_66 = arith.constant dense<0.000000e+00> : vector<8xf32>
    %220 = vector.multi_reduction <add>, %219, %cst_66 [1] : vector<8x4xf32> to vector<8xf32>
    %221 = vector.shape_cast %220 : vector<8xf32> to vector<8x1xf32>
    %222 = math.log %221 : vector<8x1xf32>
    %223 = arith.addf %216, %222 : vector<8x1xf32>
    %224 = arith.mulf %183, %3 : vector<8x4xf32>
    %cst_67 = arith.constant dense<0.000000e+00> : vector<8xf32>
    %225 = vector.multi_reduction <add>, %224, %cst_67 [1] : vector<8x4xf32> to vector<8xf32>
    %226 = vector.shape_cast %225 : vector<8xf32> to vector<8x1xf32>
    %227 = arith.subf %223, %226 : vector<8x1xf32>
    %cst_68 = arith.constant dense<0.000000e+00> : vector<8xf32>
    %228 = vector.multi_reduction <add>, %227, %cst_68 [1] : vector<8x1xf32> to vector<8xf32>
    %229 = vector.shape_cast %228 : vector<8xf32> to vector<8x1xf32>
    %cst_69 = arith.constant dense<0.000000e+00> : vector<1xf32>
    %230 = vector.multi_reduction <add>, %229, %cst_69 [0] : vector<8x1xf32> to vector<1xf32>
    %231 = vector.shape_cast %230 : vector<1xf32> to vector<1x1xf32>
    %cst_70 = arith.constant 1.000000e-01 : f32
    %232 = vector.broadcast %cst_70 : f32 to vector<1x1xf32>
    %233 = arith.mulf %232, %231 : vector<1x1xf32>
    %234 = arith.addf %214, %233 : vector<1x1xf32>
    %cst_71 = arith.constant 8.000000e+00 : f32
    %235 = vector.broadcast %cst_71 : f32 to vector<1x1xf32>
    %236 = arith.divf %234, %235 : vector<1x1xf32>
    %cst_72 = arith.constant 1.000000e+00 : f32
    %237 = vector.broadcast %cst_72 : f32 to vector<8x16xf32>
    %238 = arith.addf %237, %123 : vector<8x16xf32>
    %239 = arith.mulf %120, %120 : vector<8x16xf32>
    %240 = arith.subf %238, %239 : vector<8x16xf32>
    %241 = math.exp %123 : vector<8x16xf32>
    %242 = arith.subf %240, %241 : vector<8x16xf32>
    %cst_73 = arith.constant -5.000000e-01 : f32
    %243 = vector.broadcast %cst_73 : f32 to vector<8x16xf32>
    %244 = arith.mulf %243, %242 : vector<8x16xf32>
    %245 = vector.extract_strided_slice %244 {offsets = [0, 0], sizes = [8, 12], strides = [1, 1]} : vector<8x16xf32> to vector<8x12xf32>
    %cst_74 = arith.constant dense<0.000000e+00> : vector<8xf32>
    %246 = vector.multi_reduction <add>, %245, %cst_74 [1] : vector<8x12xf32> to vector<8xf32>
    %247 = vector.shape_cast %246 : vector<8xf32> to vector<8x1xf32>
    %cst_75 = arith.constant dense<0.000000e+00> : vector<1xf32>
    %248 = vector.multi_reduction <add>, %247, %cst_75 [0] : vector<8x1xf32> to vector<1xf32>
    %249 = vector.shape_cast %248 : vector<1xf32> to vector<1x1xf32>
    %250 = vector.extract_strided_slice %244 {offsets = [0, 12], sizes = [8, 4], strides = [1, 1]} : vector<8x16xf32> to vector<8x4xf32>
    %cst_76 = arith.constant dense<0.000000e+00> : vector<8xf32>
    %251 = vector.multi_reduction <add>, %250, %cst_76 [1] : vector<8x4xf32> to vector<8xf32>
    %252 = vector.shape_cast %251 : vector<8xf32> to vector<8x1xf32>
    %cst_77 = arith.constant dense<0.000000e+00> : vector<1xf32>
    %253 = vector.multi_reduction <add>, %252, %cst_77 [0] : vector<8x1xf32> to vector<1xf32>
    %254 = vector.shape_cast %253 : vector<1xf32> to vector<1x1xf32>
    %cst_78 = arith.constant 5.000000e+00 : f32
    %255 = vector.broadcast %cst_78 : f32 to vector<1x1xf32>
    %256 = arith.mulf %255, %254 : vector<1x1xf32>
    %257 = arith.addf %249, %256 : vector<1x1xf32>
    %cst_79 = arith.constant 8.000000e+00 : f32
    %258 = vector.broadcast %cst_79 : f32 to vector<1x1xf32>
    %259 = arith.divf %257, %258 : vector<1x1xf32>
    %260 = arith.addf %136, %149 : vector<8x16xf32>
    %cst_80 = arith.constant 5.000000e-01 : f32
    %261 = vector.broadcast %cst_80 : f32 to vector<8x16xf32>
    %262 = arith.mulf %261, %260 : vector<8x16xf32>
    %263 = arith.subf %136, %262 : vector<8x16xf32>
    %264 = arith.mulf %263, %263 : vector<8x16xf32>
    %265 = arith.subf %149, %262 : vector<8x16xf32>
    %266 = arith.mulf %265, %265 : vector<8x16xf32>
    %267 = arith.addf %264, %266 : vector<8x16xf32>
    %cst_81 = arith.constant dense<0.000000e+00> : vector<8xf32>
    %268 = vector.multi_reduction <add>, %267, %cst_81 [1] : vector<8x16xf32> to vector<8xf32>
    %269 = vector.shape_cast %268 : vector<8xf32> to vector<8x1xf32>
    %cst_82 = arith.constant dense<0.000000e+00> : vector<1xf32>
    %270 = vector.multi_reduction <add>, %269, %cst_82 [0] : vector<8x1xf32> to vector<1xf32>
    %271 = vector.shape_cast %270 : vector<1xf32> to vector<1x1xf32>
    %cst_83 = arith.constant 8.000000e+00 : f32
    %272 = vector.broadcast %cst_83 : f32 to vector<1x1xf32>
    %273 = arith.divf %271, %272 : vector<1x1xf32>
    %cst_84 = arith.constant 5.000000e+01 : f32
    %274 = vector.broadcast %cst_84 : f32 to vector<1x1xf32>
    %275 = arith.mulf %273, %274 : vector<1x1xf32>
    %276 = arith.addf %236, %259 : vector<1x1xf32>
    %277 = arith.addf %276, %275 : vector<1x1xf32>
    %278 = vector.shape_cast %277 : vector<1x1xf32> to vector<1x1xf32>
    %279 = vector.broadcast %278 : vector<1x1xf32> to vector<8x80xf32>
    %280 = tpu.concatenate %120, %136, %149, %279 in 1 : vector<8x16xf32>, vector<8x16xf32>, vector<8x16xf32>, vector<8x80xf32> -> vector<8x128xf32>
    %c0_85 = arith.constant 0 : index
    %c0_86 = arith.constant 0 : index
    %281 = vector.load %arg2[%c0_85, %c0_86] : memref<8x128xf32, #tpu.memory_space<vmem>>, vector<8x128xf32>
    tpu.vector_store %arg2[%c0_85, %c0_86], %280 {strides = array<i32>} : memref<8x128xf32, #tpu.memory_space<vmem>>, vector<8x128xf32>,
    return
  }
}

</mosaic_0001>

<llo_original>
// kernel: net_forward.1
$region0: #{net_forward.1}
  #allocation0 [shape = 'u32[]', space=smem, size = 0x4, offset = 0x4, fixed_abs, tag = 'smem constant byte address 0x4 - core index']
  #allocation1 [shape = 'u32[144,128]{1,0:T(1,128)}', space=vmem, size = 0x12000, scoped, tag = 'internal scratch']
  %s0 = inlined_call_operand.vmem [shape: f32[8,132], index: 0, kind: input, shape index: {}]
  %s1 = inlined_call_operand.hbm [shape: f32[248,128], index: 1, kind: input, shape index: {}]
  %s2 = inlined_call_operand.vmem [shape: f32[8,128], index: 2, kind: output, shape index: {}]
  %s3 = sld [smem:[#allocation0]]
  $region22: #{net_forward.1} parent=0
    _
  %s5 = ssub.s32 1, %s3
  %s6 = scalar_select 0, %s5, %s3
  $region1: #{net_forward.1} parent=0
    #allocation2 [shape = 'u8[126976]{0}', space=vmem, size = 0x1f000, scoped, tag = 'input window, operand 1, single buffered']
    #allocation3 [shape = 's32[1]{0}', space=sflag, size = 0x4, scoped, tag = 'scoped memory for net_forward.1']
    %7 = vsyncpa [#allocation3], 0
    // Predicated region
    $region2: #{net_forward.1} parent=1 // pred_check
      _
    $region3: #{net_forward.1} parent=1 // pred_check_branch
      %9 = sbr.rel (0) target = $region5
    $region4: #{net_forward.1} parent=1 // pred_region
      _
    $region5: #{net_forward.1} parent=1 // pred_fallthru
      _
    // Predicated region
    $region6: #{net_forward.1} parent=1 // pred_check
      _
    $region7: #{net_forward.1} parent=1 // pred_check_branch
      %11 = sbr.rel (0) target = $region9
    $region8: #{net_forward.1} parent=1 // pred_region
      %s13 = ssub.s32 3968, 3968
      %14 = vsyncadd [#allocation3], %s13
      %s15 = sshll.u32 [#allocation2], 4
      %s16 = int_to_ptr.vmem [resolvable:$true] %s15
      %21 = dma.hbm_to_vmem [thread:$0]  %s1, 3968, %s16, [#allocation3], 128, 128, 8
    $region9: #{net_forward.1} parent=1 // pred_fallthru
      _
    // Predicated region
    $region10: #{net_forward.1} parent=1 // pred_check
      _
    $region11: #{net_forward.1} parent=1 // pred_check_branch
      %23 = sbr.rel (0) target = $region13
    $region12: #{net_forward.1} parent=1 // pred_region
      %24 = dma.done [#allocation3], 3968
    $region13: #{net_forward.1} parent=1 // pred_fallthru
      _
    %v25 = vld [vmem:[%s0] sm:$0xff]
    %v26 = vld [vmem:[%s0 + $0x8] sm:$0xff]
    %v27 = vadd.f32 %v25, 1.0
    %v28 = vlog2.pop %v27
    %v29 = vmul.f32 %v28, 0.6931472
    %v30 = vmul.f32 -0.5, %v25
    %v31 = vadd.f32 %v30, 1.0
    %v32 = vmul.f32 %v31, %v25
    %v33 = vand.u32 2147483647, %v25
    %vm34 = vcmp.lt.f32.partialorder %v33, 0.0004427343
    %v35 = vsel %vm34, %v32, %v29
    %37 = vrot.lane.b32.xlu0 %v25, 80
    %v38 = vpop.permute.xlu0 %37
    %v40 = vmul.f32 %v35, %v38
    %vm41 = vcmask 392192
    %v42 = vsel %vm41, %v40, %v38
    %v43 = vld [vmem:[#allocation2] sm:$0xff]
    %v44 = vld [vmem:[#allocation2 + $0x8] sm:$0xff]
    %v45 = vld [vmem:[#allocation2 + $0x10] sm:$0xff]
    %v46 = vld [vmem:[#allocation2 + $0x18] sm:$0xff]
    %v47 = vld [vmem:[#allocation2 + $0x20] sm:$0xff]
    %v48 = vld [vmem:[#allocation2 + $0x28] sm:$0xff]
    %v49 = vld [vmem:[#allocation2 + $0x30] sm:$0xf]
    %v50 = vld [vmem:[#allocation2 + $0xf0] sm:$0x1]
    %v51 = vlaneseq
    %v52 = vshrl.u32 %v51, 7
    %v53 = vsub.s32 0, %v52
    %v54 = vrot.slane %v50, %v53
    %vm55 = vcmask 424960
    %v57 = vsel %vm55, %v42, 0
    %vm59 = vcmask 1043456
    %v61 = vsel %vm59, %v49, 0
    %63 = vmatprep.subr.mxu0 0.0
    %64 = vmatpush1.msra.mxu0 0.0
    %65 = vmatprep.subr.mxu0 0.0
    %66 = vmatpush1.msra.mxu0 0.0
    %67 = vmatprep.subr.mxu0 0.0
    %68 = vmatpush1.msra.mxu0 0.0
    %69 = vmatprep.subr.mxu0 0.0
    %70 = vmatpush1.msra.mxu0 0.0
    %71 = vmatprep.subr.mxu0 0.0
    %72 = vmatpush1.msra.mxu0 0.0
    %73 = vmatprep.subr.mxu0 0.0
    %74 = vmatpush1.msra.mxu0 0.0
    %75 = vmatprep.subr.mxu0 0.0
    %76 = vmatpush1.msra.mxu0 0.0
    %77 = vmatprep.subr.mxu0 0.0
    %78 = vmatpush1.msra.mxu0 0.0
    %79 = vmatprep.subr.mxu0 0.0
    %80 = vmatpush1.msra.mxu0 0.0
    %81 = vmatprep.subr.mxu0 0.0
    %82 = vmatpush1.msra.mxu0 %v61
    %83 = vmatprep.subr.mxu0 0.0
    %84 = vmatpush1.msra.mxu0 %v48
    %85 = vmatprep.subr.mxu0 0.0
    %86 = vmatpush1.msra.mxu0 %v47
    %87 = vmatprep.subr.mxu0 0.0
    %88 = vmatpush1.msra.mxu0 %v46
    %89 = vmatprep.subr.mxu0 0.0
    %90 = vmatpush1.msra.mxu0 %v45
    %91 = vmatprep.subr.mxu0 0.0
    %92 = vmatpush1.msra.mxu0 %v44
    %93 = vmatprep.subr.mxu0 0.0
    %94 = vmatpush1.msra.mxu0 %v43
    %95 = vmatprep.subr.mxu0 0.0
    %96 = vmatpush2.msra.mxu0 0.0
    %97 = vmatprep.subr.mxu0 0.0
    %98 = vmatpush2.msra.mxu0 0.0
    %99 = vmatprep.subr.mxu0 0.0
    %100 = vmatpush2.msra.mxu0 0.0
    %101 = vmatprep.subr.mxu0 0.0
    %102 = vmatpush2.msra.mxu0 0.0
    %103 = vmatprep.subr.mxu0 0.0
    %104 = vmatpush2.msra.mxu0 0.0
    %105 = vmatprep.subr.mxu0 0.0
    %106 = vmatpush2.msra.mxu0 0.0
    %107 = vmatprep.subr.mxu0 0.0
    %108 = vmatpush2.msra.mxu0 0.0
    %109 = vmatprep.subr.mxu0 0.0
    %110 = vmatpush2.msra.mxu0 0.0
    %111 = vmatprep.subr.mxu0 0.0
    %112 = vmatpush2.msra.mxu0 0.0
    %113 = vmatprep.subr.mxu0 0.0
    %114 = vmatpush2.msra.mxu0 0.0
    %115 = vmatprep.subr.mxu0 0.0
    %116 = vmatpush2.msra.mxu0 0.0
    %117 = vmatprep.subr.mxu0 0.0
    %118 = vmatpush2.msra.mxu0 0.0
    %119 = vmatprep.subr.mxu0 0.0
    %120 = vmatpush2.msra.mxu0 0.0
    %121 = vmatprep.subr.mxu0 0.0
    %122 = vmatpush2.msra.mxu0 0.0
    %123 = vmatprep.subr.mxu0 0.0
    %124 = vmatpush2.msra.mxu0 0.0
    %125 = vmatprep.subr.mxu0 0.0
    %126 = vmatpush2.msra.mxu0 0.0
    %127 = vmatprep.mubr.f32.mxu0 0.0
    %128 = vmatmul.mubr.f32.gmra.mxu0 %v57
    %v129 = vpop.f32.mrf.mxu0
    %v130 = vadd.f32 %v54, %v129
    %v131 = vpop.f32.mrf.mxu0
    %132 = vdwg.mxu0
    %v133 = vmax.f32 %v130, 0.0
    %v134 = vand.u32 2147483647, %v130
    %v135 = vsub.f32 0.0, %v134
    %v136 = vmul.f32 %v135, 1.442695
    %v137 = vpow.pop %v136
    %v138 = vadd.f32 %v137, 1.0
    %v139 = vlog2.pop %v138
    %v140 = vmul.f32 %v139, 0.6931472
    %v141 = vmul.f32 -0.5, %v137
    %v142 = vadd.f32 %v141, 1.0
    %v143 = vmul.f32 %v142, %v137
    %v144 = vand.u32 2147483647, %v137
    %vm145 = vcmp.lt.f32.partialorder %v144, 0.0004427343
    %v146 = vsel %vm145, %v143, %v140
    %v147 = vadd.f32 %v133, %v146
    %v148 = vtanh.pop %v147
    %v149 = vmul.f32 %v130, %v148
    %151 = vrot.lane.b32.xlu0 %v149, 96
    %v152 = vpop.permute.xlu0 %151
    %v153 = vld [vmem:[#allocation2 + $0x38] sm:$0xff]
    %v154 = vld [vmem:[#allocation2 + $0x40] sm:$0xff]
    %v155 = vld [vmem:[#allocation2 + $0x48] sm:$0xff]
    %v156 = vld [vmem:[#allocation2 + $0x50] sm:$0xff]
    %v157 = vld [vmem:[#allocation2 + $0xf1] sm:$0x1]
    %v158 = vlaneseq
    %v159 = vshrl.u32 %v158, 7
    %v160 = vsub.s32 0, %v159
    %v161 = vrot.slane %v157, %v160
    %vm162 = vcmask 261120
    %v163 = vsel %vm162, %v149, 0
    %v165 = vsel %vm162, %v152, 0
    %167 = vmatprep.subr.mxu0 0.0
    %168 = vmatpush1.msra.mxu0 0.0
    %169 = vmatprep.subr.mxu0 0.0
    %170 = vmatpush1.msra.mxu0 0.0
    %171 = vmatprep.subr.mxu0 0.0
    %172 = vmatpush1.msra.mxu0 0.0
    %173 = vmatprep.subr.mxu0 0.0
    %174 = vmatpush1.msra.mxu0 0.0
    %175 = vmatprep.subr.mxu0 0.0
    %176 = vmatpush1.msra.mxu0 0.0
    %177 = vmatprep.subr.mxu0 0.0
    %178 = vmatpush1.msra.mxu0 0.0
    %179 = vmatprep.subr.mxu0 0.0
    %180 = vmatpush1.msra.mxu0 0.0
    %181 = vmatprep.subr.mxu0 0.0
    %182 = vmatpush1.msra.mxu0 0.0
    %183 = vmatprep.subr.mxu0 0.0
    %184 = vmatpush1.msra.mxu0 0.0
    %185 = vmatprep.subr.mxu0 0.0
    %186 = vmatpush1.msra.mxu0 0.0
    %187 = vmatprep.subr.mxu0 0.0
    %188 = vmatpush1.msra.mxu0 0.0
    %189 = vmatprep.subr.mxu0 0.0
    %190 = vmatpush1.msra.mxu0 0.0
    %191 = vmatprep.subr.mxu0 0.0
    %192 = vmatpush1.msra.mxu0 %v156
    %193 = vmatprep.subr.mxu0 0.0
    %194 = vmatpush1.msra.mxu0 %v155
    %195 = vmatprep.subr.mxu0 0.0
    %196 = vmatpush1.msra.mxu0 %v154
    %197 = vmatprep.subr.mxu0 0.0
    %198 = vmatpush1.msra.mxu0 %v153
    %199 = vmatprep.subr.mxu0 0.0
    %200 = vmatpush2.msra.mxu0 0.0
    %201 = vmatprep.subr.mxu0 0.0
    %202 = vmatpush2.msra.mxu0 0.0
    %203 = vmatprep.subr.mxu0 0.0
    %204 = vmatpush2.msra.mxu0 0.0
    %205 = vmatprep.subr.mxu0 0.0
    %206 = vmatpush2.msra.mxu0 0.0
    %207 = vmatprep.subr.mxu0 0.0
    %208 = vmatpush2.msra.mxu0 0.0
    %209 = vmatprep.subr.mxu0 0.0
    %210 = vmatpush2.msra.mxu0 0.0
    %211 = vmatprep.subr.mxu0 0.0
    %212 = vmatpush2.msra.mxu0 0.0
    %213 = vmatprep.subr.mxu0 0.0
    %214 = vmatpush2.msra.mxu0 0.0
    %215 = vmatprep.subr.mxu0 0.0
    %216 = vmatpush2.msra.mxu0 0.0
    %217 = vmatprep.subr.mxu0 0.0
    %218 = vmatpush2.msra.mxu0 0.0
    %219 = vmatprep.subr.mxu0 0.0
    %220 = vmatpush2.msra.mxu0 0.0
    %221 = vmatprep.subr.mxu0 0.0
    %222 = vmatpush2.msra.mxu0 0.0
    %223 = vmatprep.subr.mxu0 0.0
    %224 = vmatpush2.msra.mxu0 0.0
    %225 = vmatprep.subr.mxu0 0.0
    %226 = vmatpush2.msra.mxu0 0.0
    %227 = vmatprep.subr.mxu0 0.0
    %228 = vmatpush2.msra.mxu0 0.0
    %229 = vmatprep.subr.mxu0 0.0
    %230 = vmatpush2.msra.mxu0 0.0
    %231 = vmatprep.mubr.f32.mxu0 0.0
    %232 = vmatmul.mubr.f32.gmra.mxu0 %v163
    %v233 = vpop.f32.mrf.mxu0
    %v234 = vadd.f32 %v161, %v233
    %v235 = vpop.f32.mrf.mxu0
    %236 = vmatprep.mubr.f32.mxu0 0.0
    %237 = vmatmul.mubr.f32.gmra.mxu0 %v165
    %v238 = vpop.f32.mrf.mxu0
    %v239 = vadd.f32 %v161, %v238
    %v240 = vpop.f32.mrf.mxu0
    %241 = vdwg.mxu0
    %v242 = vmax.f32 %v234, 0.0
    %v243 = vmax.f32 %v239, 0.0
    %v244 = vand.u32 2147483647, %v234
    %v245 = vand.u32 2147483647, %v239
    %v246 = vsub.f32 0.0, %v244
    %v247 = vsub.f32 0.0, %v245
    %v248 = vmul.f32 %v246, 1.442695
    %v249 = vpow.pop %v248
    %v250 = vmul.f32 %v247, 1.442695
    %v251 = vpow.pop %v250
    %v252 = vadd.f32 %v249, 1.0
    %v253 = vlog2.pop %v252
    %v254 = vmul.f32 %v253, 0.6931472
    %v255 = vmul.f32 -0.5, %v249
    %v256 = vadd.f32 %v255, 1.0
    %v257 = vmul.f32 %v256, %v249
    %v258 = vand.u32 2147483647, %v249
    %vm259 = vcmp.lt.f32.partialorder %v258, 0.0004427343
    %v260 = vsel %vm259, %v257, %v254
    %v261 = vadd.f32 %v251, 1.0
    %v262 = vlog2.pop %v261
    %v263 = vmul.f32 %v262, 0.6931472
    %v264 = vmul.f32 -0.5, %v251
    %v265 = vadd.f32 %v264, 1.0
    %v266 = vmul.f32 %v265, %v251
    %v267 = vand.u32 2147483647, %v251
    %vm268 = vcmp.lt.f32.partialorder %v267, 0.0004427343
    %v269 = vsel %vm268, %v266, %v263
    %v270 = vadd.f32 %v242, %v260
    %v271 = vadd.f32 %v243, %v269
    %v272 = vtanh.pop %v270
    %v273 = vtanh.pop %v271
    %v274 = vmul.f32 %v234, %v272
    %v275 = vmul.f32 %v239, %v273
    %v276 = vld [vmem:[#allocation2 + $0x68] sm:$0xff]
    %v277 = vld [vmem:[#allocation2 + $0x70] sm:$0xff]
    %v278 = vld [vmem:[#allocation2 + $0x78] sm:$0xff]
    %v279 = vld [vmem:[#allocation2 + $0x80] sm:$0xff]
    %v280 = vld [vmem:[#allocation2 + $0xf3] sm:$0x1]
    %v281 = vlaneseq
    %v282 = vshrl.u32 %v281, 7
    %v283 = vsub.s32 0, %v282
    %v284 = vrot.slane %v280, %v283
    %v286 = vsel %vm162, %v274, 0
    %v289 = vsel %vm162, %v275, 0
    %291 = vmatprep.subr.mxu0 0.0
    %292 = vmatpush1.msra.mxu0 0.0
    %293 = vmatprep.subr.mxu0 0.0
    %294 = vmatpush1.msra.mxu0 0.0
    %295 = vmatprep.subr.mxu0 0.0
    %296 = vmatpush1.msra.mxu0 0.0
    %297 = vmatprep.subr.mxu0 0.0
    %298 = vmatpush1.msra.mxu0 0.0
    %299 = vmatprep.subr.mxu0 0.0
    %300 = vmatpush1.msra.mxu0 0.0
    %301 = vmatprep.subr.mxu0 0.0
    %302 = vmatpush1.msra.mxu0 0.0
    %303 = vmatprep.subr.mxu0 0.0
    %304 = vmatpush1.msra.mxu0 0.0
    %305 = vmatprep.subr.mxu0 0.0
    %306 = vmatpush1.msra.mxu0 0.0
    %307 = vmatprep.subr.mxu0 0.0
    %308 = vmatpush1.msra.mxu0 0.0
    %309 = vmatprep.subr.mxu0 0.0
    %310 = vmatpush1.msra.mxu0 0.0
    %311 = vmatprep.subr.mxu0 0.0
    %312 = vmatpush1.msra.mxu0 0.0
    %313 = vmatprep.subr.mxu0 0.0
    %314 = vmatpush1.msra.mxu0 0.0
    %315 = vmatprep.subr.mxu0 0.0
    %316 = vmatpush1.msra.mxu0 %v279
    %317 = vmatprep.subr.mxu0 0.0
    %318 = vmatpush1.msra.mxu0 %v278
    %319 = vmatprep.subr.mxu0 0.0
    %320 = vmatpush1.msra.mxu0 %v277
    %321 = vmatprep.subr.mxu0 0.0
    %322 = vmatpush1.msra.mxu0 %v276
    %323 = vmatprep.subr.mxu0 0.0
    %324 = vmatpush2.msra.mxu0 0.0
    %325 = vmatprep.subr.mxu0 0.0
    %326 = vmatpush2.msra.mxu0 0.0
    %327 = vmatprep.subr.mxu0 0.0
    %328 = vmatpush2.msra.mxu0 0.0
    %329 = vmatprep.subr.mxu0 0.0
    %330 = vmatpush2.msra.mxu0 0.0
    %331 = vmatprep.subr.mxu0 0.0
    %332 = vmatpush2.msra.mxu0 0.0
    %333 = vmatprep.subr.mxu0 0.0
    %334 = vmatpush2.msra.mxu0 0.0
    %335 = vmatprep.subr.mxu0 0.0
    %336 = vmatpush2.msra.mxu0 0.0
    %337 = vmatprep.subr.mxu0 0.0
    %338 = vmatpush2.msra.mxu0 0.0
    %339 = vmatprep.subr.mxu0 0.0
    %340 = vmatpush2.msra.mxu0 0.0
    %341 = vmatprep.subr.mxu0 0.0
    %342 = vmatpush2.msra.mxu0 0.0
    %343 = vmatprep.subr.mxu0 0.0
    %344 = vmatpush2.msra.mxu0 0.0
    %345 = vmatprep.subr.mxu0 0.0
    %346 = vmatpush2.msra.mxu0 0.0
    %347 = vmatprep.subr.mxu0 0.0
    %348 = vmatpush2.msra.mxu0 0.0
    %349 = vmatprep.subr.mxu0 0.0
    %350 = vmatpush2.msra.mxu0 0.0
    %351 = vmatprep.subr.mxu0 0.0
    %352 = vmatpush2.msra.mxu0 0.0
    %353 = vmatprep.subr.mxu0 0.0
    %354 = vmatpush2.msra.mxu0 0.0
    %355 = vmatprep.mubr.f32.mxu0 0.0
    %356 = vmatmul.mubr.f32.gmra.mxu0 %v286
    %v357 = vpop.f32.mrf.mxu0
    %v358 = vadd.f32 %v284, %v357
    %v359 = vpop.f32.mrf.mxu0
    %360 = vmatprep.mubr.f32.mxu0 0.0
    %361 = vmatmul.mubr.f32.gmra.mxu0 %v289
    %v362 = vpop.f32.mrf.mxu0
    %v363 = vadd.f32 %v284, %v362
    %v364 = vpop.f32.mrf.mxu0
    %365 = vdwg.mxu0
    %v366 = vld [vmem:[#allocation2 + $0x58] sm:$0xff]
    %v367 = vld [vmem:[#allocation2 + $0x60] sm:$0xff]
    %v368 = vld [vmem:[#allocation2 + $0xf2] sm:$0x1]
    %v369 = vlaneseq
    %v370 = vshrl.u32 %v369, 7
    %v371 = vsub.s32 0, %v370
    %v372 = vrot.slane %v368, %v371
    %373 = vrot.lane.b32.xlu0 %v149, 64
    %v374 = vpop.permute.xlu0 %373
    %vm375 = vcmask 130048
    %v376 = vsel %vm375, %v374, 0
    %378 = vmatprep.subr.mxu0 0.0
    %379 = vmatpush1.msra.mxu0 0.0
    %380 = vmatprep.subr.mxu0 0.0
    %381 = vmatpush1.msra.mxu0 0.0
    %382 = vmatprep.subr.mxu0 0.0
    %383 = vmatpush1.msra.mxu0 0.0
    %384 = vmatprep.subr.mxu0 0.0
    %385 = vmatpush1.msra.mxu0 0.0
    %386 = vmatprep.subr.mxu0 0.0
    %387 = vmatpush1.msra.mxu0 0.0
    %388 = vmatprep.subr.mxu0 0.0
    %389 = vmatpush1.msra.mxu0 0.0
    %390 = vmatprep.subr.mxu0 0.0
    %391 = vmatpush1.msra.mxu0 0.0
    %392 = vmatprep.subr.mxu0 0.0
    %393 = vmatpush1.msra.mxu0 0.0
    %394 = vmatprep.subr.mxu0 0.0
    %395 = vmatpush1.msra.mxu0 0.0
    %396 = vmatprep.subr.mxu0 0.0
    %397 = vmatpush1.msra.mxu0 0.0
    %398 = vmatprep.subr.mxu0 0.0
    %399 = vmatpush1.msra.mxu0 0.0
    %400 = vmatprep.subr.mxu0 0.0
    %401 = vmatpush1.msra.mxu0 0.0
    %402 = vmatprep.subr.mxu0 0.0
    %403 = vmatpush1.msra.mxu0 0.0
    %404 = vmatprep.subr.mxu0 0.0
    %405 = vmatpush1.msra.mxu0 0.0
    %406 = vmatprep.subr.mxu0 0.0
    %407 = vmatpush1.msra.mxu0 %v367
    %408 = vmatprep.subr.mxu0 0.0
    %409 = vmatpush1.msra.mxu0 %v366
    %410 = vmatprep.subr.mxu0 0.0
    %411 = vmatpush2.msra.mxu0 0.0
    %412 = vmatprep.subr.mxu0 0.0
    %413 = vmatpush2.msra.mxu0 0.0
    %414 = vmatprep.subr.mxu0 0.0
    %415 = vmatpush2.msra.mxu0 0.0
    %416 = vmatprep.subr.mxu0 0.0
    %417 = vmatpush2.msra.mxu0 0.0
    %418 = vmatprep.subr.mxu0 0.0
    %419 = vmatpush2.msra.mxu0 0.0
    %420 = vmatprep.subr.mxu0 0.0
    %421 = vmatpush2.msra.mxu0 0.0
    %422 = vmatprep.subr.mxu0 0.0
    %423 = vmatpush2.msra.mxu0 0.0
    %424 = vmatprep.subr.mxu0 0.0
    %425 = vmatpush2.msra.mxu0 0.0
    %426 = vmatprep.subr.mxu0 0.0
    %427 = vmatpush2.msra.mxu0 0.0
    %428 = vmatprep.subr.mxu0 0.0
    %429 = vmatpush2.msra.mxu0 0.0
    %430 = vmatprep.subr.mxu0 0.0
    %431 = vmatpush2.msra.mxu0 0.0
    %432 = vmatprep.subr.mxu0 0.0
    %433 = vmatpush2.msra.mxu0 0.0
    %434 = vmatprep.subr.mxu0 0.0
    %435 = vmatpush2.msra.mxu0 0.0
    %436 = vmatprep.subr.mxu0 0.0
    %437 = vmatpush2.msra.mxu0 0.0
    %438 = vmatprep.subr.mxu0 0.0
    %439 = vmatpush2.msra.mxu0 0.0
    %440 = vmatprep.subr.mxu0 0.0
    %441 = vmatpush2.msra.mxu0 0.0
    %442 = vmatprep.mubr.f32.mxu0 0.0
    %443 = vmatmul.mubr.f32.gmra.mxu0 %v376
    %v444 = vpop.f32.mrf.mxu0
    %v445 = vadd.f32 %v372, %v444
    %v446 = vpop.f32.mrf.mxu0
    %447 = vdwg.mxu0
    %v448 = vsub.f32 0.0, %v358
    %v449 = vmin.f32 %v448, 0.0
    %v450 = vmul.f32 %v449, 1.442695
    %v451 = vpow.pop %v450
    %v452 = vmax.f32 %v448, 0.0
    %v453 = vsub.f32 0.0, %v452
    %v454 = vmul.f32 %v453, 1.442695
    %v455 = vpow.pop %v454
    %v456 = vadd.f32 %v455, 1e-12
    %v457 = vrcp.pop %v456
    %v458 = vmul.f32 1.0, %v457
    %vm459 = vcmp.lt.f32.partialorder %v448, 0.0
    %v460 = vsel %vm459, %v451, %v458
    %v461 = vsub.f32 0.0, %v363
    %v462 = vmin.f32 %v461, 0.0
    %v463 = vmul.f32 %v462, 1.442695
    %v464 = vpow.pop %v463
    %v465 = vmax.f32 %v461, 0.0
    %v466 = vsub.f32 0.0, %v465
    %v467 = vmul.f32 %v466, 1.442695
    %v468 = vpow.pop %v467
    %v469 = vadd.f32 %v468, 1e-12
    %v470 = vrcp.pop %v469
    %v471 = vmul.f32 1.0, %v470
    %vm472 = vcmp.lt.f32.partialorder %v461, 0.0
    %v473 = vsel %vm472, %v464, %v471
    %v474 = vsub.f32 0.0, %v445
    %v475 = vmin.f32 %v474, 0.0
    %v476 = vmul.f32 %v475, 1.442695
    %v477 = vpow.pop %v476
    %v478 = vmax.f32 %v474, 0.0
    %v479 = vsub.f32 0.0, %v478
    %v480 = vmul.f32 %v479, 1.442695
    %v481 = vpow.pop %v480
    %v482 = vadd.f32 %v481, 1e-12
    %v483 = vrcp.pop %v482
    %v484 = vmul.f32 1.0, %v483
    %vm485 = vcmp.lt.f32.partialorder %v474, 0.0
    %v486 = vsel %vm485, %v477, %v484
    %v487 = vadd.f32 %v460, 1.0
    %v488 = vadd.f32 %v487, %v473
    %v489 = vadd.f32 %v488, %v486
    %v490 = vrcp.pop %v489
    %492 = vrot.lane.b32.xlu0 %v460, 112
    %v493 = vpop.permute.xlu0 %492
    %v495 = vmul.f32 %v358, %v493
    %497 = vrot.lane.b32.xlu0 %v473, 112
    %v498 = vpop.permute.xlu0 %497
    %v500 = vmul.f32 %v363, %v498
    %v501 = vadd.f32 %v495, %v500
    %503 = vrot.lane.b32.xlu0 %v486, 112
    %v504 = vpop.permute.xlu0 %503
    %v506 = vmul.f32 %v445, %v504
    %v507 = vadd.f32 %v501, %v506
    %509 = vrot.lane.b32.xlu0 %v490, 112
    %v510 = vpop.permute.xlu0 %509
    %v512 = vmul.f32 %v507, %v510
    %v513 = vadd.f32 %v490, 1e-12
    %v514 = vlog2.pop %v513
    %v515 = vmul.f32 %v514, 0.6931472
    %v516 = vadd.f32 %v487, %v486
    %v517 = vrcp.pop %v516
    %v518 = vadd.f32 %v495, %v506
    %520 = vrot.lane.b32.xlu0 %v517, 112
    %v521 = vpop.permute.xlu0 %520
    %v523 = vmul.f32 %v518, %v521
    %v524 = vadd.f32 %v517, 1e-12
    %v525 = vrsqrt.pop %v524
    %v526 = vmul.f32 %v524, %v525
    %vm527 = vcmp.eq.f32.partialorder %v524, inf
    %v528 = vsel %vm527, %v524, %v526
    %vm529 = vcmp.eq.f32.partialorder %v524, 0.0
    %v530 = vand.u32 %v524, 2147483648
    %v531 = vsel %vm529, %v530, %v528
    %532 = vrot.lane.b32.xlu0 %v25, 44
    %v533 = vpop.permute.xlu0 %532
    %v535 = vmul.f32 %v531, %v533
    %537 = vrot.lane.b32.xlu0 %v535, 112
    %v538 = vpop.permute.xlu0 %537
    %v540 = vadd.f32 %v523, %v538
    %v541 = vadd.f32 %v473, 1.0
    %v542 = vadd.f32 %v541, %v486
    %v543 = vrcp.pop %v542
    %v544 = vadd.f32 %v500, %v506
    %546 = vrot.lane.b32.xlu0 %v543, 112
    %v547 = vpop.permute.xlu0 %546
    %v549 = vmul.f32 %v544, %v547
    %v550 = vadd.f32 %v543, 1e-12
    %v551 = vrsqrt.pop %v550
    %v552 = vmul.f32 %v550, %v551
    %vm553 = vcmp.eq.f32.partialorder %v550, inf
    %v554 = vsel %vm553, %v550, %v552
    %vm555 = vcmp.eq.f32.partialorder %v550, 0.0
    %v556 = vand.u32 %v550, 2147483648
    %v557 = vsel %vm555, %v556, %v554
    %559 = vrot.lane.b32.xlu0 %v25, 28
    %v560 = vpop.permute.xlu0 %559
    %561 = vrot.lane.b32.xlu0 %v26, 28
    %v562 = vpop.permute.xlu0 %561
    %vm563 = vcmask 228352
    %v564 = vsel %vm563, %v560, %v562
    %v566 = vmul.f32 %v557, %v564
    %568 = vrot.lane.b32.xlu0 %v566, 112
    %v569 = vpop.permute.xlu0 %568
    %v571 = vadd.f32 %v549, %v569
    %573 = vrot.lane.b32.xlu0 %v512, 4
    %v574 = vpop.permute.xlu0 %573
    %v576 = vsel %vm375, %v512, %v574
    %v577 = vld [vmem:[#allocation2 + $0x88] sm:$0xff]
    %v578 = vld [vmem:[#allocation2 + $0x90] sm:$0xff]
    %v579 = vld [vmem:[#allocation2 + $0x98] sm:$0xf]
    %v580 = vld [vmem:[#allocation2 + $0xf4] sm:$0x1]
    %v581 = vlaneseq
    %v582 = vshrl.u32 %v581, 7
    %v583 = vsub.s32 0, %v582
    %v584 = vrot.slane %v580, %v583
    %vm585 = vcmask 162816
    %v587 = vsel %vm585, %v576, 0
    %v590 = vsel %vm59, %v579, 0
    %592 = vmatprep.subr.mxu0 0.0
    %593 = vmatpush1.msra.mxu0 0.0
    %594 = vmatprep.subr.mxu0 0.0
    %595 = vmatpush1.msra.mxu0 0.0
    %596 = vmatprep.subr.mxu0 0.0
    %597 = vmatpush1.msra.mxu0 0.0
    %598 = vmatprep.subr.mxu0 0.0
    %599 = vmatpush1.msra.mxu0 0.0
    %600 = vmatprep.subr.mxu0 0.0
    %601 = vmatpush1.msra.mxu0 0.0
    %602 = vmatprep.subr.mxu0 0.0
    %603 = vmatpush1.msra.mxu0 0.0
    %604 = vmatprep.subr.mxu0 0.0
    %605 = vmatpush1.msra.mxu0 0.0
    %606 = vmatprep.subr.mxu0 0.0
    %607 = vmatpush1.msra.mxu0 0.0
    %608 = vmatprep.subr.mxu0 0.0
    %609 = vmatpush1.msra.mxu0 0.0
    %610 = vmatprep.subr.mxu0 0.0
    %611 = vmatpush1.msra.mxu0 0.0
    %612 = vmatprep.subr.mxu0 0.0
    %613 = vmatpush1.msra.mxu0 0.0
    %614 = vmatprep.subr.mxu0 0.0
    %615 = vmatpush1.msra.mxu0 0.0
    %616 = vmatprep.subr.mxu0 0.0
    %617 = vmatpush1.msra.mxu0 0.0
    %618 = vmatprep.subr.mxu0 0.0
    %619 = vmatpush1.msra.mxu0 %v590
    %620 = vmatprep.subr.mxu0 0.0
    %621 = vmatpush1.msra.mxu0 %v578
    %622 = vmatprep.subr.mxu0 0.0
    %623 = vmatpush1.msra.mxu0 %v577
    %624 = vmatprep.subr.mxu0 0.0
    %625 = vmatpush2.msra.mxu0 0.0
    %626 = vmatprep.subr.mxu0 0.0
    %627 = vmatpush2.msra.mxu0 0.0
    %628 = vmatprep.subr.mxu0 0.0
    %629 = vmatpush2.msra.mxu0 0.0
    %630 = vmatprep.subr.mxu0 0.0
    %631 = vmatpush2.msra.mxu0 0.0
    %632 = vmatprep.subr.mxu0 0.0
    %633 = vmatpush2.msra.mxu0 0.0
    %634 = vmatprep.subr.mxu0 0.0
    %635 = vmatpush2.msra.mxu0 0.0
    %636 = vmatprep.subr.mxu0 0.0
    %637 = vmatpush2.msra.mxu0 0.0
    %638 = vmatprep.subr.mxu0 0.0
    %639 = vmatpush2.msra.mxu0 0.0
    %640 = vmatprep.subr.mxu0 0.0
    %641 = vmatpush2.msra.mxu0 0.0
    %642 = vmatprep.subr.mxu0 0.0
    %643 = vmatpush2.msra.mxu0 0.0
    %644 = vmatprep.subr.mxu0 0.0
    %645 = vmatpush2.msra.mxu0 0.0
    %646 = vmatprep.subr.mxu0 0.0
    %647 = vmatpush2.msra.mxu0 0.0
    %648 = vmatprep.subr.mxu0 0.0
    %649 = vmatpush2.msra.mxu0 0.0
    %650 = vmatprep.subr.mxu0 0.0
    %651 = vmatpush2.msra.mxu0 0.0
    %652 = vmatprep.subr.mxu0 0.0
    %653 = vmatpush2.msra.mxu0 0.0
    %654 = vmatprep.subr.mxu0 0.0
    %655 = vmatpush2.msra.mxu0 0.0
    %656 = vmatprep.mubr.f32.mxu0 0.0
    %657 = vmatmul.mubr.f32.gmra.mxu0 %v587
    %v658 = vpop.f32.mrf.mxu0
    %v659 = vadd.f32 %v584, %v658
    %v660 = vpop.f32.mrf.mxu0
    %661 = vdwg.mxu0
    %v662 = vmax.f32 %v659, 0.0
    %v663 = vand.u32 2147483647, %v659
    %v664 = vsub.f32 0.0, %v663
    %v665 = vmul.f32 %v664, 1.442695
    %v666 = vpow.pop %v665
    %v667 = vadd.f32 %v666, 1.0
    %v668 = vlog2.pop %v667
    %v669 = vmul.f32 %v668, 0.6931472
    %v670 = vmul.f32 -0.5, %v666
    %v671 = vadd.f32 %v670, 1.0
    %v672 = vmul.f32 %v671, %v666
    %v673 = vand.u32 2147483647, %v666
    %vm674 = vcmp.lt.f32.partialorder %v673, 0.0004427343
    %v675 = vsel %vm674, %v672, %v669
    %v676 = vadd.f32 %v662, %v675
    %v677 = vtanh.pop %v676
    %v678 = vmul.f32 %v659, %v677
    %v679 = vld [vmem:[#allocation2 + $0xa0] sm:$0xff]
    %v680 = vld [vmem:[#allocation2 + $0xa8] sm:$0xff]
    %v681 = vld [vmem:[#allocation2 + $0xb0] sm:$0xff]
    %v682 = vld [vmem:[#allocation2 + $0xb8] sm:$0xff]
    %v683 = vld [vmem:[#allocation2 + $0xc0] sm:$0xff]
    %v684 = vld [vmem:[#allocation2 + $0xc8] sm:$0xff]
    %v685 = vld [vmem:[#allocation2 + $0xf5] sm:$0x1]
    %v686 = vlaneseq
    %v687 = vshrl.u32 %v686, 7
    %v688 = vsub.s32 0, %v687
    %v689 = vrot.slane %v685, %v688
    %v691 = vsel %vm41, %v678, 0
    %693 = vmatprep.subr.mxu0 0.0
    %694 = vmatpush1.msra.mxu0 0.0
    %695 = vmatprep.subr.mxu0 0.0
    %696 = vmatpush1.msra.mxu0 0.0
    %697 = vmatprep.subr.mxu0 0.0
    %698 = vmatpush1.msra.mxu0 0.0
    %699 = vmatprep.subr.mxu0 0.0
    %700 = vmatpush1.msra.mxu0 0.0
    %701 = vmatprep.subr.mxu0 0.0
    %702 = vmatpush1.msra.mxu0 0.0
    %703 = vmatprep.subr.mxu0 0.0
    %704 = vmatpush1.msra.mxu0 0.0
    %705 = vmatprep.subr.mxu0 0.0
    %706 = vmatpush1.msra.mxu0 0.0
    %707 = vmatprep.subr.mxu0 0.0
    %708 = vmatpush1.msra.mxu0 0.0
    %709 = vmatprep.subr.mxu0 0.0
    %710 = vmatpush1.msra.mxu0 0.0
    %711 = vmatprep.subr.mxu0 0.0
    %712 = vmatpush1.msra.mxu0 0.0
    %713 = vmatprep.subr.mxu0 0.0
    %714 = vmatpush1.msra.mxu0 %v684
    %715 = vmatprep.subr.mxu0 0.0
    %716 = vmatpush1.msra.mxu0 %v683
    %717 = vmatprep.subr.mxu0 0.0
    %718 = vmatpush1.msra.mxu0 %v682
    %719 = vmatprep.subr.mxu0 0.0
    %720 = vmatpush1.msra.mxu0 %v681
    %721 = vmatprep.subr.mxu0 0.0
    %722 = vmatpush1.msra.mxu0 %v680
    %723 = vmatprep.subr.mxu0 0.0
    %724 = vmatpush1.msra.mxu0 %v679
    %725 = vmatprep.subr.mxu0 0.0
    %726 = vmatpush2.msra.mxu0 0.0
    %727 = vmatprep.subr.mxu0 0.0
    %728 = vmatpush2.msra.mxu0 0.0
    %729 = vmatprep.subr.mxu0 0.0
    %730 = vmatpush2.msra.mxu0 0.0
    %731 = vmatprep.subr.mxu0 0.0
    %732 = vmatpush2.msra.mxu0 0.0
    %733 = vmatprep.subr.mxu0 0.0
    %734 = vmatpush2.msra.mxu0 0.0
    %735 = vmatprep.subr.mxu0 0.0
    %736 = vmatpush2.msra.mxu0 0.0
    %737 = vmatprep.subr.mxu0 0.0
    %738 = vmatpush2.msra.mxu0 0.0
    %739 = vmatprep.subr.mxu0 0.0
    %740 = vmatpush2.msra.mxu0 0.0
    %741 = vmatprep.subr.mxu0 0.0
    %742 = vmatpush2.msra.mxu0 0.0
    %743 = vmatprep.subr.mxu0 0.0
    %744 = vmatpush2.msra.mxu0 0.0
    %745 = vmatprep.subr.mxu0 0.0
    %746 = vmatpush2.msra.mxu0 0.0
    %747 = vmatprep.subr.mxu0 0.0
    %748 = vmatpush2.msra.mxu0 0.0
    %749 = vmatprep.subr.mxu0 0.0
    %750 = vmatpush2.msra.mxu0 0.0
    %751 = vmatprep.subr.mxu0 0.0
    %752 = vmatpush2.msra.mxu0 0.0
    %753 = vmatprep.subr.mxu0 0.0
    %754 = vmatpush2.msra.mxu0 0.0
    %755 = vmatprep.subr.mxu0 0.0
    %756 = vmatpush2.msra.mxu0 0.0
    %757 = vmatprep.mubr.f32.mxu0 0.0
    %758 = vmatmul.mubr.f32.gmra.mxu0 %v691
    %v759 = vpop.f32.mrf.mxu0
    %v760 = vadd.f32 %v689, %v759
    %v761 = vpop.f32.mrf.mxu0
    %762 = vdwg.mxu0
    %v763 = vmax.f32 %v760, 0.0
    %v764 = vand.u32 2147483647, %v760
    %v765 = vsub.f32 0.0, %v764
    %v766 = vmul.f32 %v765, 1.442695
    %v767 = vpow.pop %v766
    %v768 = vadd.f32 %v767, 1.0
    %v769 = vlog2.pop %v768
    %v770 = vmul.f32 %v769, 0.6931472
    %v771 = vmul.f32 -0.5, %v767
    %v772 = vadd.f32 %v771, 1.0
    %v773 = vmul.f32 %v772, %v767
    %v774 = vand.u32 2147483647, %v767
    %vm775 = vcmp.lt.f32.partialorder %v774, 0.0004427343
    %v776 = vsel %vm775, %v773, %v770
    %v777 = vadd.f32 %v763, %v776
    %v778 = vtanh.pop %v777
    %v779 = vmul.f32 %v760, %v778
    %v780 = vld [vmem:[#allocation2 + $0xd0] sm:$0xff]
    %v781 = vld [vmem:[#allocation2 + $0xd8] sm:$0xff]
    %v782 = vld [vmem:[#allocation2 + $0xe0] sm:$0xff]
    %v783 = vld [vmem:[#allocation2 + $0xe8] sm:$0xff]
    %v784 = vld [vmem:[#allocation2 + $0xf6] sm:$0x1]
    %v785 = vlaneseq
    %v786 = vshrl.u32 %v785, 7
    %v787 = vsub.s32 0, %v786
    %v788 = vrot.slane %v784, %v787
    %v790 = vsel %vm162, %v779, 0
    %792 = vmatprep.subr.mxu0 0.0
    %793 = vmatpush1.msra.mxu0 0.0
    %794 = vmatprep.subr.mxu0 0.0
    %795 = vmatpush1.msra.mxu0 0.0
    %796 = vmatprep.subr.mxu0 0.0
    %797 = vmatpush1.msra.mxu0 0.0
    %798 = vmatprep.subr.mxu0 0.0
    %799 = vmatpush1.msra.mxu0 0.0
    %800 = vmatprep.subr.mxu0 0.0
    %801 = vmatpush1.msra.mxu0 0.0
    %802 = vmatprep.subr.mxu0 0.0
    %803 = vmatpush1.msra.mxu0 0.0
    %804 = vmatprep.subr.mxu0 0.0
    %805 = vmatpush1.msra.mxu0 0.0
    %806 = vmatprep.subr.mxu0 0.0
    %807 = vmatpush1.msra.mxu0 0.0
    %808 = vmatprep.subr.mxu0 0.0
    %809 = vmatpush1.msra.mxu0 0.0
    %810 = vmatprep.subr.mxu0 0.0
    %811 = vmatpush1.msra.mxu0 0.0
    %812 = vmatprep.subr.mxu0 0.0
    %813 = vmatpush1.msra.mxu0 0.0
    %814 = vmatprep.subr.mxu0 0.0
    %815 = vmatpush1.msra.mxu0 0.0
    %816 = vmatprep.subr.mxu0 0.0
    %817 = vmatpush1.msra.mxu0 %v783
    %818 = vmatprep.subr.mxu0 0.0
    %819 = vmatpush1.msra.mxu0 %v782
    %820 = vmatprep.subr.mxu0 0.0
    %821 = vmatpush1.msra.mxu0 %v781
    %822 = vmatprep.subr.mxu0 0.0
    %823 = vmatpush1.msra.mxu0 %v780
    %824 = vmatprep.subr.mxu0 0.0
    %825 = vmatpush2.msra.mxu0 0.0
    %826 = vmatprep.subr.mxu0 0.0
    %827 = vmatpush2.msra.mxu0 0.0
    %828 = vmatprep.subr.mxu0 0.0
    %829 = vmatpush2.msra.mxu0 0.0
    %830 = vmatprep.subr.mxu0 0.0
    %831 = vmatpush2.msra.mxu0 0.0
    %832 = vmatprep.subr.mxu0 0.0
    %833 = vmatpush2.msra.mxu0 0.0
    %834 = vmatprep.subr.mxu0 0.0
    %835 = vmatpush2.msra.mxu0 0.0
    %836 = vmatprep.subr.mxu0 0.0
    %837 = vmatpush2.msra.mxu0 0.0
    %838 = vmatprep.subr.mxu0 0.0
    %839 = vmatpush2.msra.mxu0 0.0
    %840 = vmatprep.subr.mxu0 0.0
    %841 = vmatpush2.msra.mxu0 0.0
    %842 = vmatprep.subr.mxu0 0.0
    %843 = vmatpush2.msra.mxu0 0.0
    %844 = vmatprep.subr.mxu0 0.0
    %845 = vmatpush2.msra.mxu0 0.0
    %846 = vmatprep.subr.mxu0 0.0
    %847 = vmatpush2.msra.mxu0 0.0
    %848 = vmatprep.subr.mxu0 0.0
    %849 = vmatpush2.msra.mxu0 0.0
    %850 = vmatprep.subr.mxu0 0.0
    %851 = vmatpush2.msra.mxu0 0.0
    %852 = vmatprep.subr.mxu0 0.0
    %853 = vmatpush2.msra.mxu0 0.0
    %854 = vmatprep.subr.mxu0 0.0
    %855 = vmatpush2.msra.mxu0 0.0
    %856 = vmatprep.mubr.f32.mxu0 0.0
    %857 = vmatmul.mubr.f32.gmra.mxu0 %v790
    %v858 = vpop.f32.mrf.mxu0
    %v859 = vadd.f32 %v788, %v858
    %v860 = vpop.f32.mrf.mxu0
    %861 = vdwg.mxu0
    %v862 = vmul.f32 %v859, 1.442695
    %v863 = vpow.pop %v862
    %v864 = vmul.f32 %v25, %v859
    %v865 = vsub.f32 %v863, %v864
    %vm866 = vcmp.gt.f32.partialorder %v25, 1.0
    %v867 = vsel %vm866, %v25, 1.0
    %v868 = vlog2.pop %v867
    %v869 = vmul.f32 %v868, 0.6931472
    %v870 = vmul.f32 %v867, %v869
    %v871 = vsub.f32 %v870, %v867
    %v872 = vmul.f32 %v867, 6.2831855
    %v873 = vlog2.pop %v872
    %v874 = vmul.f32 %v873, 0.6931472
    %v875 = vmul.f32 %v874, 0.5
    %v876 = vadd.f32 %v871, %v875
    %v877 = vsel %vm866, %v876, 0.0
    %v878 = vadd.f32 %v865, %v877
    %v879 = vmul.f32 %v878, %v38
    %v880 = vsel %vm41, %v879, 0.0
    %881 = vadd.xlane.f32.xlu0 %v880
    %v882 = vpop.xlane.xlu0 %881
    %v883 = vrot.slane %v882, 4
    %v884 = vadd.f32 %v882, %v883
    %v885 = vrot.slane %v884, 2
    %v886 = vadd.f32 %v884, %v885
    %v887 = vrot.slane %v886, 1
    %v888 = vadd.f32 %v886, %v887
    %vm889 = vcmask 294144
    %v890 = vsel %vm889, %v760, -inf
    %891 = vmax.xlane.f32.xlu0 %v890
    %v892 = vpop.xlane.xlu0 %891
    %v893 = vsub.f32 %v760, %v892
    %v894 = vmul.f32 %v893, 1.442695
    %v895 = vpow.pop %v894
    %897 = vrot.lane.b32.xlu0 %v895, 96
    %v898 = vpop.permute.xlu0 %897
    %vm900 = vcmask 31744
    %v901 = vsel %vm900, %v898, 0.0
    %902 = vadd.xlane.f32.xlu0 %v901
    %v903 = vpop.xlane.xlu0 %902
    %v904 = vlog2.pop %v903
    %v905 = vmul.f32 %v904, 0.6931472
    %v906 = vadd.f32 %v892, %v905
    %907 = vrot.lane.b32.xlu0 %v25, 64
    %v908 = vpop.permute.xlu0 %907
    %v910 = vmul.f32 %v760, %v908
    %912 = vrot.lane.b32.xlu0 %v910, 96
    %v913 = vpop.permute.xlu0 %912
    %v915 = vsel %vm900, %v913, 0.0
    %916 = vadd.xlane.f32.xlu0 %v915
    %v917 = vpop.xlane.xlu0 %916
    %v918 = vsub.f32 %v906, %v917
    %v919 = vadd.f32 %v918, 0.0
    %v920 = vrot.slane %v919, 4
    %v921 = vadd.f32 %v919, %v920
    %v922 = vrot.slane %v921, 2
    %v923 = vadd.f32 %v921, %v922
    %v924 = vrot.slane %v923, 1
    %v925 = vadd.f32 %v923, %v924
    %v926 = vmul.f32 %v925, 0.1
    %v927 = vadd.f32 %v888, %v926
    %v928 = vrcp.pop 8.0
    %v929 = vmul.f32 %v927, %v928
    %v930 = vadd.f32 %v515, 1.0
    %v931 = vmul.f32 %v512, %v512
    %933 = vrot.lane.b32.xlu0 %v931, 16
    %v934 = vpop.permute.xlu0 %933
    %v936 = vsub.f32 %v930, %v934
    %v937 = vmul.f32 %v515, 1.442695
    %v938 = vpow.pop %v937
    %v939 = vsub.f32 %v936, %v938
    %v940 = vmul.f32 %v939, -0.5
    %942 = vrot.lane.b32.xlu0 %v940, 112
    %v943 = vpop.permute.xlu0 %942
    %vm945 = vcmask 97280
    %v946 = vsel %vm945, %v943, 0.0
    %947 = vadd.xlane.f32.xlu0 %v946
    %v948 = vpop.xlane.xlu0 %947
    %v949 = vrot.slane %v948, 4
    %v950 = vadd.f32 %v948, %v949
    %v951 = vrot.slane %v950, 2
    %v952 = vadd.f32 %v950, %v951
    %v953 = vrot.slane %v952, 1
    %v954 = vadd.f32 %v952, %v953
    %955 = vrot.lane.b32.xlu0 %v940, 100
    %v956 = vpop.permute.xlu0 %955
    %v958 = vsel %vm900, %v956, 0.0
    %959 = vadd.xlane.f32.xlu0 %v958
    %v960 = vpop.xlane.xlu0 %959
    %v961 = vrot.slane %v960, 4
    %v962 = vadd.f32 %v960, %v961
    %v963 = vrot.slane %v962, 2
    %v964 = vadd.f32 %v962, %v963
    %v965 = vrot.slane %v964, 1
    %v966 = vadd.f32 %v964, %v965
    %v967 = vmul.f32 %v966, 5.0
    %v968 = vadd.f32 %v954, %v967
    %v969 = vmul.f32 %v968, %v928
    %v970 = vadd.f32 %v540, %v571
    %v971 = vmul.f32 %v970, 0.5
    %v972 = vsub.f32 %v540, %v971
    %v973 = vmul.f32 %v972, %v972
    %v974 = vsub.f32 %v571, %v971
    %v975 = vmul.f32 %v974, %v974
    %v976 = vadd.f32 %v973, %v975
    %v977 = vsel %vm375, %v976, 0.0
    %978 = vadd.xlane.f32.xlu0 %v977
    %v979 = vpop.xlane.xlu0 %978
    %v980 = vrot.slane %v979, 4
    %v981 = vadd.f32 %v979, %v980
    %v982 = vrot.slane %v981, 2
    %v983 = vadd.f32 %v981, %v982
    %v984 = vrot.slane %v983, 1
    %v985 = vadd.f32 %v983, %v984
    %v986 = vmul.f32 %v985, %v928
    %v987 = vmul.f32 %v986, 50.0
    %v988 = vadd.f32 %v929, %v969
    %v989 = vadd.f32 %v988, %v987
    %991 = vrot.lane.b32.xlu0 %v540, 16
    %v992 = vpop.permute.xlu0 %991
    %995 = vrot.lane.b32.xlu0 %v571, 32
    %v996 = vpop.permute.xlu0 %995
    %v998 = vsel %vm375, %v512, %v992
    %v999 = vsel %vm162, %v998, %v996
    %v1000 = vsel %vm41, %v999, %v989
    %1001 = vst [vmem:[%s2] sm:$0xff] %v1000
    // Predicated region
    $region14: #{net_forward.1} parent=1 // pred_check
      _
    $region15: #{net_forward.1} parent=1 // pred_check_branch
      %1003 = sbr.rel (0) target = $region17
    $region16: #{net_forward.1} parent=1 // pred_region
      _
    $region17: #{net_forward.1} parent=1 // pred_fallthru
      _
    // Predicated region
    $region18: #{net_forward.1} parent=1 // pred_check
      _
    $region19: #{net_forward.1} parent=1 // pred_check_branch
      %1005 = sbr.rel (0) target = $region21
    $region20: #{net_forward.1} parent=1 // pred_region
      _
    $region21: #{net_forward.1} parent=1 // pred_fallthru
      _
    %1006 = vsyncpa [#allocation3], 1

</llo_original>
